<compile_context>
chip_gen: v7x
topology: tpu7x:2x2x1
jax: 0.10.0
libtpu: 0.0.40
codegen_flags: <defaults>
</compile_context>

<pallas_src>
import functools

import jax
import jax.numpy as jnp
import numpy as np
from jax.experimental import pallas as pl
from jax.experimental.pallas import tpu as pltpu


# ---------------------------------------------------------------------------
# Pallas kernel: one batch element x one 128-wide output-channel tile
# ---------------------------------------------------------------------------
def _conv_patch_embed_kernel(
    xph_ref,   # (1, 4, H_out+1, W_out+1, C_in)  phase-decomposed padded input
    w_ref,     # (9, C_in, E_TILE)               tap-major fused conv*BN weight
    b_ref,     # (1, E_TILE)                     fused bias (f32)
    o_ref,     # (1, H_out, W_out, E_TILE)
    *,
    h_out,
    w_out,
    c_in,
):
    e_tile = o_ref.shape[-1]
    acc = jnp.zeros((h_out * w_out, e_tile), jnp.float32)

    # 3x3 taps, stride 2.  Phase plane index = (kh%2, kw%2); the residual
    # shift inside a phase plane is only 0 or 1 along H (free, row offset)
    # and W (single sublane offset).  Each tap is a small matmul on the MXU,
    # accumulated in f32.
    for kh in range(3):
        for kw in range(3):
            p = (kh % 2) * 2 + (kw % 2)
            dh, dw = kh // 2, kw // 2
            win = xph_ref[0, p, dh:dh + h_out, dw:dw + w_out, :]  # (Ho,Wo,Cin)
            lhs = win.reshape(h_out * w_out, c_in)
            acc += jnp.dot(lhs, w_ref[kh * 3 + kw],
                           preferred_element_type=jnp.float32)

    out = acc + b_ref[...].astype(jnp.float32)
    o_ref[0] = out.reshape(h_out, w_out, e_tile).astype(o_ref.dtype)


# ---------------------------------------------------------------------------
# Wrapper (matches the PyTorch module's forward: returns (y, out_size))
# ---------------------------------------------------------------------------
def conv_patch_embed(x_nchw, params, *, kernel_size=3, stride=2, eps=1e-5,
                     compute_dtype=jnp.float32, e_tile=128):
    """x_nchw: (N, C_in, H, W).  params = (conv_w (E,Cin,3,3), conv_b (E,),
    bn_gamma, bn_beta, bn_mean, bn_var).  Returns (y (N,E,H_out,W_out),
    (H_out, W_out))."""
    assert kernel_size == 3 and stride == 2, "kernel specialized for k=3, s=2"
    w, b, gamma, beta, mean, var = params
    E, C_in, K, _ = w.shape
    N, C, H, W = x_nchw.shape
    assert C == C_in
    pad = kernel_size // 2
    H_out = (H + 2 * pad - K) // stride + 1
    W_out = (W + 2 * pad - K) // stride + 1

    # ---- fold eval-mode BN into the conv ------------------------------------
    scale = gamma / jnp.sqrt(var + eps)                     # (E,)
    w_f = w * scale[:, None, None, None]                    # (E, Cin, 3, 3)
    b_f = beta + (b - mean) * scale                         # (E,)

    # tap-major weight (9, Cin, E), pad E up to a multiple of 128 (lane-dense)
    w_k = jnp.transpose(w_f, (2, 3, 1, 0)).reshape(K * K, C_in, E)
    E_pad = ((E + e_tile - 1) // e_tile) * e_tile
    if E_pad != E:
        w_k = jnp.pad(w_k, ((0, 0), (0, 0), (0, E_pad - E)))
        b_k = jnp.pad(b_f, (0, E_pad - E))
    else:
        b_k = b_f
    b_k = b_k.reshape(1, E_pad).astype(jnp.float32)
    w_k = w_k.astype(compute_dtype)

    # ---- NHWC, zero-pad, split into the 4 stride-2 phase planes -------------
    x = jnp.transpose(x_nchw, (0, 2, 3, 1))                 # (N, H, W, Cin)
    Hp, Wp = 2 * (H_out + 1), 2 * (W_out + 1)               # >= H+2, W+2
    xp = jnp.pad(x, ((0, 0), (pad, Hp - H - pad), (pad, Wp - W - pad), (0, 0)))
    # xph[n, 2*a+b, i, j, c] = xp[n, 2*i+a, 2*j+b, c]
    xph = xp.reshape(N, H_out + 1, 2, W_out + 1, 2, C_in)
    xph = jnp.transpose(xph, (0, 2, 4, 1, 3, 5))
    xph = xph.reshape(N, 4, H_out + 1, W_out + 1, C_in).astype(compute_dtype)

    kernel = functools.partial(_conv_patch_embed_kernel,
                               h_out=H_out, w_out=W_out, c_in=C_in)

    out_pad = pl.pallas_call(
        kernel,
        out_shape=jax.ShapeDtypeStruct((N, H_out, W_out, E_pad), x_nchw.dtype),
        grid_spec=pltpu.PrefetchScalarGridSpec(
            num_scalar_prefetch=0,
            grid=(N, E_pad // e_tile),
            in_specs=[
                pl.BlockSpec((1, 4, H_out + 1, W_out + 1, C_in),
                             lambda n, e: (n, 0, 0, 0, 0)),
                pl.BlockSpec((K * K, C_in, e_tile), lambda n, e: (0, 0, e)),
                pl.BlockSpec((1, e_tile), lambda n, e: (0, e)),
            ],
            out_specs=pl.BlockSpec((1, H_out, W_out, e_tile),
                                   lambda n, e: (n, 0, 0, e)),
        ),
        compiler_params=pltpu.CompilerParams(
            dimension_semantics=("parallel", "parallel"),
            vmem_limit_bytes=32 * 1024 * 1024),
    )(xph, w_k, b_k)

    out = out_pad[..., :E]                                  # drop lane padding
    out_nchw = jnp.transpose(out, (0, 3, 1, 2))             # back to NCHW
    return out_nchw, (H_out, W_out)


# ---------------------------------------------------------------------------
# Pure-JAX reference (mirrors the PyTorch forward, eval-mode BN)
# ---------------------------------------------------------------------------
def _reference(x_nchw, params, eps=1e-5):
    w, b, gamma, beta, mean, var = params
    out = jax.lax.conv_general_dilated(
        x_nchw, w, window_strides=(2, 2), padding=[(1, 1), (1, 1)],
        dimension_numbers=("NCHW", "OIHW", "NCHW"))
    out = out + b.reshape(1, -1, 1, 1)
    scale = (gamma / jnp.sqrt(var + eps)).reshape(1, -1, 1, 1)
    out = (out - mean.reshape(1, -1, 1, 1)) * scale + beta.reshape(1, -1, 1, 1)
    return out, (out.shape[2], out.shape[3])


# ---------------------------------------------------------------------------
# Main
# ---------------------------------------------------------------------------
if __name__ == "__main__":
    N, C_in, H, W = 2, 4, 16, 16
    embed_dims = 32

    key = jax.random.PRNGKey(0)
    ks = jax.random.split(key, 8)
    conv_w = jax.random.normal(ks[0], (embed_dims, C_in, 3, 3), jnp.float32) * 0.1
    conv_b = jax.random.normal(ks[1], (embed_dims,), jnp.float32) * 0.1
    bn_gamma = 1.0 + 0.1 * jax.random.normal(ks[2], (embed_dims,), jnp.float32)
    bn_beta = 0.1 * jax.random.normal(ks[3], (embed_dims,), jnp.float32)
    bn_mean = 0.1 * jax.random.normal(ks[4], (embed_dims,), jnp.float32)
    bn_var = 0.5 + jax.random.uniform(ks[5], (embed_dims,), jnp.float32)
    params = (conv_w, conv_b, bn_gamma, bn_beta, bn_mean, bn_var)

    x = jax.random.normal(ks[6], (N, C_in, H, W), jnp.float32)

    ref, ref_size = _reference(x, params)
    ref = jax.block_until_ready(ref)

    # f32 path (v5e-friendly): tight tolerance
    out, out_size = conv_patch_embed(x, params, compute_dtype=jnp.float32)
    out = jax.block_until_ready(out)
    assert out.shape == ref.shape
    assert out_size == ref_size
    np.testing.assert_allclose(np.asarray(out), np.asarray(ref),
                               rtol=1e-4, atol=1e-4)

    # bf16 operand path (v6e/v7x fast path), f32 accumulation: loose tolerance
    out_bf, _ = conv_patch_embed(x, params, compute_dtype=jnp.bfloat16)
    out_bf = jax.block_until_ready(out_bf)
    np.testing.assert_allclose(np.asarray(out_bf), np.asarray(ref),
                               rtol=5e-2, atol=5e-2)

    print("KERNEL_OK")
</pallas_src>

<mosaic_0001>
module attributes {stable_mosaic.version = 11 : i64} {
  func.func @_conv_patch_embed_kernel(%arg0: i32, %arg1: i32, %arg2: memref<1x4x9x9x4xf32, #tpu.memory_space<vmem>>, %arg3: memref<9x4x128xf32, #tpu.memory_space<vmem>>, %arg4: memref<1x128xf32, #tpu.memory_space<vmem>>, %arg5: memref<1x8x8x128xf32, #tpu.memory_space<vmem>>) attributes {dimension_semantics = [#tpu.dimension_semantics<parallel>, #tpu.dimension_semantics<parallel>], iteration_bounds = array<i64: 2, 1>, scalar_prefetch = 0 : i64, scratch_operands = 0 : i64, tpu.core_type = #tpu.core_type<tc>, window_params = [{transform_indices = @transform_0, window_bounds = array<i64: 1, 4, 9, 9, 4>}, {transform_indices = @transform_1, window_bounds = array<i64: 9, 4, 128>}, {transform_indices = @transform_2, window_bounds = array<i64: 1, 128>}, {transform_indices = @transform_3, window_bounds = array<i64: 1, 8, 8, 128>}]} {
    %cst = arith.constant 0.000000e+00 : f32
    %0 = vector.broadcast %cst : f32 to vector<64x128xf32>
    %c0 = arith.constant 0 : index
    %c0_0 = arith.constant 0 : index
    %c0_1 = arith.constant 0 : index
    %c0_2 = arith.constant 0 : index
    %c0_3 = arith.constant 0 : index
    %1 = vector.load %arg2[%c0, %c0_0, %c0_1, %c0_2, %c0_3] : memref<1x4x9x9x4xf32, #tpu.memory_space<vmem>>, vector<1x1x8x8x4xf32>
    %2 = vector.shape_cast %1 : vector<1x1x8x8x4xf32> to vector<8x8x4xf32>
    %3 = vector.shape_cast %2 : vector<8x8x4xf32> to vector<64x4xf32>
    %c0_4 = arith.constant 0 : index
    %c0_5 = arith.constant 0 : index
    %c0_6 = arith.constant 0 : index
    %4 = vector.load %arg3[%c0_4, %c0_5, %c0_6] : memref<9x4x128xf32, #tpu.memory_space<vmem>>, vector<1x4x128xf32>
    %5 = vector.shape_cast %4 : vector<1x4x128xf32> to vector<4x128xf32>
    %cst_7 = arith.constant dense<0.000000e+00> : vector<64x128xf32>
    %6 = tpu.matmul %3, %5, %cst_7 {dimension_numbers = #tpu.dot_dimension_numbers<[1], [0], [0], [1], [0, 0, 1, 1], [], []>} : vector<64x4xf32>, vector<4x128xf32>, vector<64x128xf32> -> vector<64x128xf32>
    %7 = arith.addf %0, %6 : vector<64x128xf32>
    %c0_8 = arith.constant 0 : index
    %c1 = arith.constant 1 : index
    %c0_9 = arith.constant 0 : index
    %c0_10 = arith.constant 0 : index
    %c0_11 = arith.constant 0 : index
    %8 = vector.load %arg2[%c0_8, %c1, %c0_9, %c0_10, %c0_11] : memref<1x4x9x9x4xf32, #tpu.memory_space<vmem>>, vector<1x1x8x8x4xf32>
    %9 = vector.shape_cast %8 : vector<1x1x8x8x4xf32> to vector<8x8x4xf32>
    %10 = vector.shape_cast %9 : vector<8x8x4xf32> to vector<64x4xf32>
    %c1_12 = arith.constant 1 : index
    %c0_13 = arith.constant 0 : index
    %c0_14 = arith.constant 0 : index
    %11 = vector.load %arg3[%c1_12, %c0_13, %c0_14] : memref<9x4x128xf32, #tpu.memory_space<vmem>>, vector<1x4x128xf32>
    %12 = vector.shape_cast %11 : vector<1x4x128xf32> to vector<4x128xf32>
    %cst_15 = arith.constant dense<0.000000e+00> : vector<64x128xf32>
    %13 = tpu.matmul %10, %12, %cst_15 {dimension_numbers = #tpu.dot_dimension_numbers<[1], [0], [0], [1], [0, 0, 1, 1], [], []>} : vector<64x4xf32>, vector<4x128xf32>, vector<64x128xf32> -> vector<64x128xf32>
    %14 = arith.addf %7, %13 : vector<64x128xf32>
    %c0_16 = arith.constant 0 : index
    %c0_17 = arith.constant 0 : index
    %c0_18 = arith.constant 0 : index
    %c1_19 = arith.constant 1 : index
    %c0_20 = arith.constant 0 : index
    %15 = vector.load %arg2[%c0_16, %c0_17, %c0_18, %c1_19, %c0_20] : memref<1x4x9x9x4xf32, #tpu.memory_space<vmem>>, vector<1x1x8x8x4xf32>
    %16 = vector.shape_cast %15 : vector<1x1x8x8x4xf32> to vector<8x8x4xf32>
    %17 = vector.shape_cast %16 : vector<8x8x4xf32> to vector<64x4xf32>
    %c2 = arith.constant 2 : index
    %c0_21 = arith.constant 0 : index
    %c0_22 = arith.constant 0 : index
    %18 = vector.load %arg3[%c2, %c0_21, %c0_22] : memref<9x4x128xf32, #tpu.memory_space<vmem>>, vector<1x4x128xf32>
    %19 = vector.shape_cast %18 : vector<1x4x128xf32> to vector<4x128xf32>
    %cst_23 = arith.constant dense<0.000000e+00> : vector<64x128xf32>
    %20 = tpu.matmul %17, %19, %cst_23 {dimension_numbers = #tpu.dot_dimension_numbers<[1], [0], [0], [1], [0, 0, 1, 1], [], []>} : vector<64x4xf32>, vector<4x128xf32>, vector<64x128xf32> -> vector<64x128xf32>
    %21 = arith.addf %14, %20 : vector<64x128xf32>
    %c0_24 = arith.constant 0 : index
    %c2_25 = arith.constant 2 : index
    %c0_26 = arith.constant 0 : index
    %c0_27 = arith.constant 0 : index
    %c0_28 = arith.constant 0 : index
    %22 = vector.load %arg2[%c0_24, %c2_25, %c0_26, %c0_27, %c0_28] : memref<1x4x9x9x4xf32, #tpu.memory_space<vmem>>, vector<1x1x8x8x4xf32>
    %23 = vector.shape_cast %22 : vector<1x1x8x8x4xf32> to vector<8x8x4xf32>
    %24 = vector.shape_cast %23 : vector<8x8x4xf32> to vector<64x4xf32>
    %c3 = arith.constant 3 : index
    %c0_29 = arith.constant 0 : index
    %c0_30 = arith.constant 0 : index
    %25 = vector.load %arg3[%c3, %c0_29, %c0_30] : memref<9x4x128xf32, #tpu.memory_space<vmem>>, vector<1x4x128xf32>
    %26 = vector.shape_cast %25 : vector<1x4x128xf32> to vector<4x128xf32>
    %cst_31 = arith.constant dense<0.000000e+00> : vector<64x128xf32>
    %27 = tpu.matmul %24, %26, %cst_31 {dimension_numbers = #tpu.dot_dimension_numbers<[1], [0], [0], [1], [0, 0, 1, 1], [], []>} : vector<64x4xf32>, vector<4x128xf32>, vector<64x128xf32> -> vector<64x128xf32>
    %28 = arith.addf %21, %27 : vector<64x128xf32>
    %c0_32 = arith.constant 0 : index
    %c3_33 = arith.constant 3 : index
    %c0_34 = arith.constant 0 : index
    %c0_35 = arith.constant 0 : index
    %c0_36 = arith.constant 0 : index
    %29 = vector.load %arg2[%c0_32, %c3_33, %c0_34, %c0_35, %c0_36] : memref<1x4x9x9x4xf32, #tpu.memory_space<vmem>>, vector<1x1x8x8x4xf32>
    %30 = vector.shape_cast %29 : vector<1x1x8x8x4xf32> to vector<8x8x4xf32>
    %31 = vector.shape_cast %30 : vector<8x8x4xf32> to vector<64x4xf32>
    %c4 = arith.constant 4 : index
    %c0_37 = arith.constant 0 : index
    %c0_38 = arith.constant 0 : index
    %32 = vector.load %arg3[%c4, %c0_37, %c0_38] : memref<9x4x128xf32, #tpu.memory_space<vmem>>, vector<1x4x128xf32>
    %33 = vector.shape_cast %32 : vector<1x4x128xf32> to vector<4x128xf32>
    %cst_39 = arith.constant dense<0.000000e+00> : vector<64x128xf32>
    %34 = tpu.matmul %31, %33, %cst_39 {dimension_numbers = #tpu.dot_dimension_numbers<[1], [0], [0], [1], [0, 0, 1, 1], [], []>} : vector<64x4xf32>, vector<4x128xf32>, vector<64x128xf32> -> vector<64x128xf32>
    %35 = arith.addf %28, %34 : vector<64x128xf32>
    %c0_40 = arith.constant 0 : index
    %c2_41 = arith.constant 2 : index
    %c0_42 = arith.constant 0 : index
    %c1_43 = arith.constant 1 : index
    %c0_44 = arith.constant 0 : index
    %36 = vector.load %arg2[%c0_40, %c2_41, %c0_42, %c1_43, %c0_44] : memref<1x4x9x9x4xf32, #tpu.memory_space<vmem>>, vector<1x1x8x8x4xf32>
    %37 = vector.shape_cast %36 : vector<1x1x8x8x4xf32> to vector<8x8x4xf32>
    %38 = vector.shape_cast %37 : vector<8x8x4xf32> to vector<64x4xf32>
    %c5 = arith.constant 5 : index
    %c0_45 = arith.constant 0 : index
    %c0_46 = arith.constant 0 : index
    %39 = vector.load %arg3[%c5, %c0_45, %c0_46] : memref<9x4x128xf32, #tpu.memory_space<vmem>>, vector<1x4x128xf32>
    %40 = vector.shape_cast %39 : vector<1x4x128xf32> to vector<4x128xf32>
    %cst_47 = arith.constant dense<0.000000e+00> : vector<64x128xf32>
    %41 = tpu.matmul %38, %40, %cst_47 {dimension_numbers = #tpu.dot_dimension_numbers<[1], [0], [0], [1], [0, 0, 1, 1], [], []>} : vector<64x4xf32>, vector<4x128xf32>, vector<64x128xf32> -> vector<64x128xf32>
    %42 = arith.addf %35, %41 : vector<64x128xf32>
    %c0_48 = arith.constant 0 : index
    %c0_49 = arith.constant 0 : index
    %c1_50 = arith.constant 1 : index
    %c0_51 = arith.constant 0 : index
    %c0_52 = arith.constant 0 : index
    %43 = vector.load %arg2[%c0_48, %c0_49, %c1_50, %c0_51, %c0_52] : memref<1x4x9x9x4xf32, #tpu.memory_space<vmem>>, vector<1x1x8x8x4xf32>
    %44 = vector.shape_cast %43 : vector<1x1x8x8x4xf32> to vector<8x8x4xf32>
    %45 = vector.shape_cast %44 : vector<8x8x4xf32> to vector<64x4xf32>
    %c6 = arith.constant 6 : index
    %c0_53 = arith.constant 0 : index
    %c0_54 = arith.constant 0 : index
    %46 = vector.load %arg3[%c6, %c0_53, %c0_54] : memref<9x4x128xf32, #tpu.memory_space<vmem>>, vector<1x4x128xf32>
    %47 = vector.shape_cast %46 : vector<1x4x128xf32> to vector<4x128xf32>
    %cst_55 = arith.constant dense<0.000000e+00> : vector<64x128xf32>
    %48 = tpu.matmul %45, %47, %cst_55 {dimension_numbers = #tpu.dot_dimension_numbers<[1], [0], [0], [1], [0, 0, 1, 1], [], []>} : vector<64x4xf32>, vector<4x128xf32>, vector<64x128xf32> -> vector<64x128xf32>
    %49 = arith.addf %42, %48 : vector<64x128xf32>
    %c0_56 = arith.constant 0 : index
    %c1_57 = arith.constant 1 : index
    %c1_58 = arith.constant 1 : index
    %c0_59 = arith.constant 0 : index
    %c0_60 = arith.constant 0 : index
    %50 = vector.load %arg2[%c0_56, %c1_57, %c1_58, %c0_59, %c0_60] : memref<1x4x9x9x4xf32, #tpu.memory_space<vmem>>, vector<1x1x8x8x4xf32>
    %51 = vector.shape_cast %50 : vector<1x1x8x8x4xf32> to vector<8x8x4xf32>
    %52 = vector.shape_cast %51 : vector<8x8x4xf32> to vector<64x4xf32>
    %c7 = arith.constant 7 : index
    %c0_61 = arith.constant 0 : index
    %c0_62 = arith.constant 0 : index
    %53 = vector.load %arg3[%c7, %c0_61, %c0_62] : memref<9x4x128xf32, #tpu.memory_space<vmem>>, vector<1x4x128xf32>
    %54 = vector.shape_cast %53 : vector<1x4x128xf32> to vector<4x128xf32>
    %cst_63 = arith.constant dense<0.000000e+00> : vector<64x128xf32>
    %55 = tpu.matmul %52, %54, %cst_63 {dimension_numbers = #tpu.dot_dimension_numbers<[1], [0], [0], [1], [0, 0, 1, 1], [], []>} : vector<64x4xf32>, vector<4x128xf32>, vector<64x128xf32> -> vector<64x128xf32>
    %56 = arith.addf %49, %55 : vector<64x128xf32>
    %c0_64 = arith.constant 0 : index
    %c0_65 = arith.constant 0 : index
    %c1_66 = arith.constant 1 : index
    %c1_67 = arith.constant 1 : index
    %c0_68 = arith.constant 0 : index
    %57 = vector.load %arg2[%c0_64, %c0_65, %c1_66, %c1_67, %c0_68] : memref<1x4x9x9x4xf32, #tpu.memory_space<vmem>>, vector<1x1x8x8x4xf32>
    %58 = vector.shape_cast %57 : vector<1x1x8x8x4xf32> to vector<8x8x4xf32>
    %59 = vector.shape_cast %58 : vector<8x8x4xf32> to vector<64x4xf32>
    %c8 = arith.constant 8 : index
    %c0_69 = arith.constant 0 : index
    %c0_70 = arith.constant 0 : index
    %60 = vector.load %arg3[%c8, %c0_69, %c0_70] : memref<9x4x128xf32, #tpu.memory_space<vmem>>, vector<1x4x128xf32>
    %61 = vector.shape_cast %60 : vector<1x4x128xf32> to vector<4x128xf32>
    %cst_71 = arith.constant dense<0.000000e+00> : vector<64x128xf32>
    %62 = tpu.matmul %59, %61, %cst_71 {dimension_numbers = #tpu.dot_dimension_numbers<[1], [0], [0], [1], [0, 0, 1, 1], [], []>} : vector<64x4xf32>, vector<4x128xf32>, vector<64x128xf32> -> vector<64x128xf32>
    %63 = arith.addf %56, %62 : vector<64x128xf32>
    %c0_72 = arith.constant 0 : index
    %c0_73 = arith.constant 0 : index
    %64 = vector.load %arg4[%c0_72, %c0_73] : memref<1x128xf32, #tpu.memory_space<vmem>>, vector<1x128xf32>
    %65 = vector.broadcast %64 : vector<1x128xf32> to vector<64x128xf32>
    %66 = arith.addf %63, %65 : vector<64x128xf32>
    %67 = vector.shape_cast %66 : vector<64x128xf32> to vector<8x8x128xf32>
    %c0_74 = arith.constant 0 : index
    %c0_75 = arith.constant 0 : index
    %c0_76 = arith.constant 0 : index
    %c0_77 = arith.constant 0 : index
    %68 = vector.load %arg5[%c0_74, %c0_75, %c0_76, %c0_77] : memref<1x8x8x128xf32, #tpu.memory_space<vmem>>, vector<1x8x8x128xf32>
    %69 = vector.shape_cast %68 : vector<1x8x8x128xf32> to vector<8x8x128xf32>
    %70 = vector.shape_cast %67 : vector<8x8x128xf32> to vector<1x8x8x128xf32>
    tpu.vector_store %arg5[%c0_74, %c0_75, %c0_76, %c0_77], %70 {strides = array<i32>} : memref<1x8x8x128xf32, #tpu.memory_space<vmem>>, vector<1x8x8x128xf32>,
    return
  }
  func.func @transform_0(%arg0: i32, %arg1: i32) -> (i32, i32, i32, i32, i32) {
    %c0_i32 = arith.constant 0 : i32
    %c0_i32_0 = arith.constant 0 : i32
    %c0_i32_1 = arith.constant 0 : i32
    %c0_i32_2 = arith.constant 0 : i32
    %c0_i32_3 = arith.constant 0 : i32
    return %arg0, %c0_i32, %c0_i32_0, %c0_i32_1, %c0_i32_2 : i32, i32, i32, i32, i32
  }
  func.func @transform_1(%arg0: i32, %arg1: i32) -> (i32, i32, i32) {
    %c0_i32 = arith.constant 0 : i32
    %c0_i32_0 = arith.constant 0 : i32
    %c0_i32_1 = arith.constant 0 : i32
    return %c0_i32, %c0_i32_0, %arg1 : i32, i32, i32
  }
  func.func @transform_2(%arg0: i32, %arg1: i32) -> (i32, i32) {
    %c0_i32 = arith.constant 0 : i32
    %c0_i32_0 = arith.constant 0 : i32
    return %c0_i32, %arg1 : i32, i32
  }
  func.func @transform_3(%arg0: i32, %arg1: i32) -> (i32, i32, i32, i32) {
    %c0_i32 = arith.constant 0 : i32
    %c0_i32_0 = arith.constant 0 : i32
    %c0_i32_1 = arith.constant 0 : i32
    return %arg0, %c0_i32, %c0_i32_0, %arg1 : i32, i32, i32, i32
  }
}

</mosaic_0001>

<llo_original>
// kernel: tpu_custom_call.1
$region0: #{tpu_custom_call.1}
  #allocation0 [shape = 'u32[]', space=smem, size = 0x4, offset = 0x4, fixed_abs, tag = 'smem constant byte address 0x4 - core index']
  #allocation1 [shape = 'u32[144,128]{1,0:T(1,128)}', space=vmem, size = 0x12000, scoped, tag = 'internal scratch']
  %s0 = inlined_call_operand.vmem [shape: f32[2,4,9,9,4], index: 0, kind: input, shape index: {}]
  %s1 = inlined_call_operand.vmem [shape: f32[9,4,128], index: 1, kind: input, shape index: {}]
  %s2 = inlined_call_operand.vmem [shape: f32[1,128], index: 2, kind: input, shape index: {}]
  %s3 = inlined_call_operand.hbm [shape: f32[2,8,8,128], index: 3, kind: output, shape index: {}]
  %s4 = sld [smem:[#allocation0]]
  $region45: #{tpu_custom_call.1} parent=0
    _
  %s6 = ssub.s32 1, %s4
  %s7 = scalar_select 0, %s6, %s4
  $region1: #{tpu_custom_call.1} parent=0
    #allocation2 [shape = 'u8[65536]{0}', space=vmem, size = 0x10000, scoped, tag = 'output window, operand 0']
    #allocation3 [shape = 's32[2]{0}', space=sflag, size = 0x8, scoped, tag = 'scoped memory for tpu_custom_call.1']
    %8 = vsyncpa [#allocation3], 0
    %s9 = scalar_lea.sflag [#allocation3], 1
    %10 = vsyncpa %s9, 0
    loop: start=0, step=1, limit=4
    $region2: #{tpu_custom_call.1} parent=1 // loop_pre_header
      _
    $region3: #{tpu_custom_call.1} parent=1 // loop_header
      %s12 = sphi 0, %s16
      %p13 = scmp.ge.s32.totalorder %s12, 4
      %s19 = sphi 0, %s31
      %s20 = sphi 0, %s27
      %s21 = sphi 0, %s19
      %s22 = sphi 0, %s20
      %s23 = sphi 0, %s21
      %s24 = sphi 0, %s22
      %s34 = sphi 0, %s36
      %s37 = sphi 0, %s34
      %s38 = sphi 0, %s37
      %s54 = sphi 0, %s38
      %s60 = sphi 0, %s62
      %s63 = sphi 0, %s60
      %s64 = sphi 0, %s63
      %s80 = sphi 0, %s64
      %s86 = sphi 0, %s88
      %s89 = sphi 0, %s86
      %s90 = sphi 0, %s89
      %s106 = sphi 0, %s90
      %s114 = sphi 0, %s116
      %s117 = sphi 0, %s114
      %s118 = sphi 0, %s117
      %s134 = sphi 0, %s118
    $region4: #{tpu_custom_call.1} parent=1 // loop_header_branch
      %15 = sbr.rel (%p13) target = $region8
    $region5: #{tpu_custom_call.1} parent=1 // loop_body
      %s17 = ssub.s32 %s12, 1
      %s18 = ssub.s32 %s12, 2
      %s25 = sadd.s32 1, %s20
      %p26 = scmp.ge.s32.totalorder %s25, 1
      %s27 = scalar_select %p26, 0, %s25
      %s28 = sadd.s32 1, %s19
      %s29 = scalar_select %p26, %s28, %s19
      %p30 = scmp.ge.s32.totalorder %s29, 2
      %s31 = scalar_select %p30, 0, %s29
      %s32 = ssub.s32 %s19, %s31
      %p33 = scmp.eq.s32.totalorder %s32, 0
      %s35 = sadd.s32 %s34, 1
      %s36 = scalar_select %p33, %s34, %s35
      %p39 = pneg %p33
      %p40 = scmp.eq.s32.totalorder %s12, 1
      %p41 = por %p39, %p40
      %p42 = scmp.ne.s32.totalorder %s34, %s37
      %p43 = scmp.eq.s32.totalorder %s12, 0
      %p44 = por %p42, %p43
      %p45 = scmp.ne.s32.totalorder %s34, %s37
      %p46 = scmp.eq.s32.totalorder %s17, 1
      %p47 = por %p45, %p46
      %p48 = scmp.ne.s32.totalorder %s37, %s38
      %p49 = scmp.eq.s32.totalorder %s17, 0
      %p50 = por %p48, %p49
      %p51 = scmp.ne.s32.totalorder %s37, %s38
      %p52 = scmp.eq.s32.totalorder %s18, 1
      %p53 = por %p51, %p52
      %p55 = scmp.ne.s32.totalorder %s38, %s54
      %p56 = scmp.eq.s32.totalorder %s18, 0
      %p57 = por %p55, %p56
      %s58 = ssub.s32 %s20, %s27
      %p59 = scmp.eq.s32.totalorder %s58, 0
      %s61 = sadd.s32 %s60, 1
      %s62 = scalar_select %p59, %s60, %s61
      %p65 = pneg %p59
      %p66 = scmp.eq.s32.totalorder %s12, 1
      %p67 = por %p65, %p66
      %p68 = scmp.ne.s32.totalorder %s60, %s63
      %p69 = scmp.eq.s32.totalorder %s12, 0
      %p70 = por %p68, %p69
      %p71 = scmp.ne.s32.totalorder %s60, %s63
      %p72 = scmp.eq.s32.totalorder %s17, 1
      %p73 = por %p71, %p72
      %p74 = scmp.ne.s32.totalorder %s63, %s64
      %p75 = scmp.eq.s32.totalorder %s17, 0
      %p76 = por %p74, %p75
      %p77 = scmp.ne.s32.totalorder %s63, %s64
      %p78 = scmp.eq.s32.totalorder %s18, 1
      %p79 = por %p77, %p78
      %p81 = scmp.ne.s32.totalorder %s64, %s80
      %p82 = scmp.eq.s32.totalorder %s18, 0
      %p83 = por %p81, %p82
      %s84 = ssub.s32 %s20, %s27
      %p85 = scmp.eq.s32.totalorder %s84, 0
      %s87 = sadd.s32 %s86, 1
      %s88 = scalar_select %p85, %s86, %s87
      %p91 = pneg %p85
      %p92 = scmp.eq.s32.totalorder %s12, 1
      %p93 = por %p91, %p92
      %p94 = scmp.ne.s32.totalorder %s86, %s89
      %p95 = scmp.eq.s32.totalorder %s12, 0
      %p96 = por %p94, %p95
      %p97 = scmp.ne.s32.totalorder %s86, %s89
      %p98 = scmp.eq.s32.totalorder %s17, 1
      %p99 = por %p97, %p98
      %p100 = scmp.ne.s32.totalorder %s89, %s90
      %p101 = scmp.eq.s32.totalorder %s17, 0
      %p102 = por %p100, %p101
      %p103 = scmp.ne.s32.totalorder %s89, %s90
      %p104 = scmp.eq.s32.totalorder %s18, 1
      %p105 = por %p103, %p104
      %p107 = scmp.ne.s32.totalorder %s90, %s106
      %p108 = scmp.eq.s32.totalorder %s18, 0
      %p109 = por %p107, %p108
      %s110 = ssub.s32 %s19, %s31
      %s111 = ssub.s32 %s20, %s27
      %s112 = sor.u32 %s110, %s111
      %p113 = scmp.eq.s32.totalorder %s112, 0
      %s115 = sadd.s32 %s114, 1
      %s116 = scalar_select %p113, %s114, %s115
      %p119 = pneg %p113
      %p120 = scmp.eq.s32.totalorder %s12, 1
      %p121 = por %p119, %p120
      %p122 = scmp.ne.s32.totalorder %s114, %s117
      %p123 = scmp.eq.s32.totalorder %s12, 0
      %p124 = por %p122, %p123
      %p125 = scmp.ne.s32.totalorder %s114, %s117
      %p126 = scmp.eq.s32.totalorder %s17, 1
      %p127 = por %p125, %p126
      %p128 = scmp.ne.s32.totalorder %s117, %s118
      %p129 = scmp.eq.s32.totalorder %s17, 0
      %p130 = por %p128, %p129
      %p131 = scmp.ne.s32.totalorder %s117, %s118
      %p132 = scmp.eq.s32.totalorder %s18, 1
      %p133 = por %p131, %p132
      %p135 = scmp.ne.s32.totalorder %s118, %s134
      %p136 = scmp.eq.s32.totalorder %s18, 0
      %p137 = por %p135, %p136
      %p138 = scmp.le.s32.totalorder 1, %s12
      %p139 = scmp.lt.s32.totalorder %s12, 3
      %p140 = pnand %p138, %p139
      %p141 = pneg %p140
      // Predicated region
      $region9: #{tpu_custom_call.1} parent=5 // pred_check
        _
      $region10: #{tpu_custom_call.1} parent=5 // pred_check_branch
        %143 = sbr.rel (%p140) target = $region12
      $region11: #{tpu_custom_call.1} parent=5 // pred_region
        %s144 = ssub.s32 %s12, 1
        // Predicated region
        $region13: #{tpu_custom_call.1} parent=11 // pred_check
          %p145 = pneg %p76
        $region14: #{tpu_custom_call.1} parent=11 // pred_check_branch
          %147 = sbr.rel (%p145) target = $region16
        $region15: #{tpu_custom_call.1} parent=11 // pred_region
          %p148 = scmp.lt.s32.totalorder %s22, 0
          %s149 = scalar_select %p148, %s22, 0
          %s150 = smul.addr %s149, 4
          %s151 = scalar_lea.vmem %s1, %s150
        $region16: #{tpu_custom_call.1} parent=11 // pred_fallthru
          _
        // Predicated region
        $region17: #{tpu_custom_call.1} parent=11 // pred_check
          %p152 = pneg %p102
        $region18: #{tpu_custom_call.1} parent=11 // pred_check_branch
          %154 = sbr.rel (%p152) target = $region20
        $region19: #{tpu_custom_call.1} parent=11 // pred_region
          %p155 = scmp.lt.s32.totalorder %s22, 0
          %s156 = scalar_select %p155, %s22, 0
          %s157 = scalar_lea.vmem %s2, %s156
        $region20: #{tpu_custom_call.1} parent=11 // pred_fallthru
          _
      $region12: #{tpu_custom_call.1} parent=5 // pred_fallthru
        _
      %p158 = scmp.lt.s32.totalorder %s12, 2
      // Predicated region
      $region21: #{tpu_custom_call.1} parent=5 // pred_check
        %p159 = pneg %p158
      $region22: #{tpu_custom_call.1} parent=5 // pred_check_branch
        %161 = sbr.rel (%p159) target = $region24
      $region23: #{tpu_custom_call.1} parent=5 // pred_region
        // Predicated region
        $region25: #{tpu_custom_call.1} parent=23 // pred_check
          %p162 = pneg %p44
        $region26: #{tpu_custom_call.1} parent=23 // pred_check_branch
          %164 = sbr.rel (%p162) target = $region28
        $region27: #{tpu_custom_call.1} parent=23 // pred_region
          %p165 = scmp.lt.s32.totalorder %s19, 1
          %s166 = scalar_select %p165, %s19, 1
          %s167 = smul.addr %s166, 72
          %s168 = smul.addr %s167, 8
          %s169 = scalar_lea.vmem %s0, %s168
        $region28: #{tpu_custom_call.1} parent=23 // pred_fallthru
          _
      $region24: #{tpu_custom_call.1} parent=5 // pred_fallthru
        _
      %p170 = scmp.le.s32.totalorder 1, %s12
      %p171 = scmp.lt.s32.totalorder %s12, 3
      %p172 = pnand %p170, %p171
      %p173 = pneg %p172
      // Predicated region
      $region29: #{tpu_custom_call.1} parent=5 // pred_check
        _
      $region30: #{tpu_custom_call.1} parent=5 // pred_check_branch
        %175 = sbr.rel (%p172) target = $region32
      $region31: #{tpu_custom_call.1} parent=5 // pred_region
        %s176 = ssub.s32 %s12, 1
        %p177 = scmp.lt.s32.totalorder %s21, 1
        %s178 = scalar_select %p177, %s21, 1
        %s179 = smul.addr %s178, 72
        %s180 = smul.addr %s179, 8
        %s181 = scalar_lea.vmem %s0, %s180
        %p182 = pneg %p50
        %p183 = pneg %p47
        %p184 = scmp.lt.s32.totalorder %s22, 0
        %s185 = scalar_select %p184, %s22, 0
        %s186 = smul.addr %s185, 4
        %s187 = scalar_lea.vmem %s1, %s186
        %p188 = pneg %p76
        %p189 = pneg %p73
        %p190 = scmp.lt.s32.totalorder %s22, 0
        %s191 = scalar_select %p190, %s22, 0
        %s192 = scalar_lea.vmem %s2, %s191
        %p193 = pneg %p102
        %p194 = pneg %p99
        %p195 = pneg %p130
        %p196 = pneg %p127
        %s197 = sand.u32 %s117, 1
        %s198 = scalar_lea.sflag [#allocation3], %s197
        %s199 = sand.u32 %s117, 1
        %s200 = smul.addr %s199, 64
        %s201 = scalar_lea.vmem [#allocation2], %s200
        %p202 = scmp.lt.s32.totalorder %s21, 1
        %s203 = scalar_select %p202, %s21, 1
        %s204 = smul.addr %s203, 72
        %s205 = smul.addr %s204, 8
        %s206 = scalar_lea.vmem %s0, %s205
        %p207 = scmp.lt.s32.totalorder %s22, 0
        %s208 = scalar_select %p207, %s22, 0
        %s209 = smul.addr %s208, 4
        %s210 = scalar_lea.vmem %s1, %s209
        %p211 = scmp.lt.s32.totalorder %s22, 0
        %s212 = scalar_select %p211, %s22, 0
        %s213 = scalar_lea.vmem %s2, %s212
        %v214 = vld [vmem:[%s206] sm:$0xff]
        %v215 = vld [vmem:[%s206 + $0x10] sm:$0xff]
        %v216 = vld [vmem:[%s206 + $0x20] sm:$0xff]
        %v217 = vld [vmem:[%s206 + $0x30] sm:$0xff]
        %v218 = vld [vmem:[%s206 + $0x40] sm:$0xff]
        %v219 = vld [vmem:[%s206 + $0x50] sm:$0xff]
        %v220 = vld [vmem:[%s206 + $0x60] sm:$0xff]
        %v221 = vld [vmem:[%s206 + $0x70] sm:$0xff]
        %v222 = vld [vmem:[%s210] sm:$0xf]
        %s223 = scalar_lea.vmem %s206, 144
        %v224 = vld [vmem:[%s223] sm:$0xff]
        %v225 = vld [vmem:[%s223 + $0x10] sm:$0xff]
        %v226 = vld [vmem:[%s223 + $0x20] sm:$0xff]
        %v227 = vld [vmem:[%s223 + $0x30] sm:$0xff]
        %v228 = vld [vmem:[%s223 + $0x40] sm:$0xff]
        %v229 = vld [vmem:[%s223 + $0x50] sm:$0xff]
        %v230 = vld [vmem:[%s223 + $0x60] sm:$0xff]
        %v231 = vld [vmem:[%s223 + $0x70] sm:$0xff]
        %s232 = scalar_lea.vmem %s210, 4
        %v233 = vld [vmem:[%s232] sm:$0xf]
        %vm234 = vcmask 31744
        %v236 = vsel %vm234, %v224, 0
        %v239 = vsel %vm234, %v225, 0
        %v242 = vsel %vm234, %v226, 0
        %v245 = vsel %vm234, %v227, 0
        %v248 = vsel %vm234, %v228, 0
        %v251 = vsel %vm234, %v229, 0
        %v254 = vsel %vm234, %v230, 0
        %v257 = vsel %vm234, %v231, 0
        %vm259 = vcmask 1043456
        %v261 = vsel %vm259, %v233, 0
        %263 = vmatprep.subr.mxu0 0.0
        %264 = vmatpush1.msra.mxu0 %v261
        %265 = vmatprep.subr.mxu0 0.0
        %266 = vmatpush1.msra.mxu0 0.0
        %267 = vmatprep.subr.mxu0 0.0
        %268 = vmatpush1.msra.mxu0 0.0
        %269 = vmatprep.subr.mxu0 0.0
        %270 = vmatpush1.msra.mxu0 0.0
        %271 = vmatprep.subr.mxu0 0.0
        %272 = vmatpush1.msra.mxu0 0.0
        %273 = vmatprep.subr.mxu0 0.0
        %274 = vmatpush1.msra.mxu0 0.0
        %275 = vmatprep.subr.mxu0 0.0
        %276 = vmatpush1.msra.mxu0 0.0
        %277 = vmatprep.subr.mxu0 0.0
        %278 = vmatpush1.msra.mxu0 0.0
        %279 = vmatprep.subr.mxu0 0.0
        %280 = vmatpush1.msra.mxu0 0.0
        %281 = vmatprep.subr.mxu0 0.0
        %282 = vmatpush1.msra.mxu0 0.0
        %283 = vmatprep.subr.mxu0 0.0
        %284 = vmatpush1.msra.mxu0 0.0
        %285 = vmatprep.subr.mxu0 0.0
        %286 = vmatpush1.msra.mxu0 0.0
        %287 = vmatprep.subr.mxu0 0.0
        %288 = vmatpush1.msra.mxu0 0.0
        %289 = vmatprep.subr.mxu0 0.0
        %290 = vmatpush1.msra.mxu0 0.0
        %291 = vmatprep.subr.mxu0 0.0
        %292 = vmatpush1.msra.mxu0 0.0
        %293 = vmatprep.subr.mxu0 0.0
        %294 = vmatpush1.msra.mxu0 0.0
        %295 = vmatprep.subr.mxu0 0.0
        %296 = vmatpush1.msra.mxu0 0.0
        %297 = vmatprep.subr.mxu0 0.0
        %298 = vmatpush1.msra.mxu0 0.0
        %299 = vmatprep.subr.mxu0 0.0
        %300 = vmatpush1.msra.mxu0 0.0
        %301 = vmatprep.subr.mxu0 0.0
        %302 = vmatpush1.msra.mxu0 0.0
        %303 = vmatprep.subr.mxu0 0.0
        %304 = vmatpush1.msra.mxu0 0.0
        %305 = vmatprep.subr.mxu0 0.0
        %306 = vmatpush1.msra.mxu0 0.0
        %307 = vmatprep.subr.mxu0 0.0
        %308 = vmatpush1.msra.mxu0 0.0
        %309 = vmatprep.subr.mxu0 0.0
        %310 = vmatpush1.msra.mxu0 0.0
        %311 = vmatprep.subr.mxu0 0.0
        %312 = vmatpush1.msra.mxu0 0.0
        %313 = vmatprep.subr.mxu0 0.0
        %314 = vmatpush1.msra.mxu0 0.0
        %315 = vmatprep.subr.mxu0 0.0
        %316 = vmatpush1.msra.mxu0 0.0
        %317 = vmatprep.subr.mxu0 0.0
        %318 = vmatpush1.msra.mxu0 0.0
        %319 = vmatprep.subr.mxu0 0.0
        %320 = vmatpush1.msra.mxu0 0.0
        %321 = vmatprep.subr.mxu0 0.0
        %322 = vmatpush1.msra.mxu0 0.0
        %323 = vmatprep.subr.mxu0 0.0
        %324 = vmatpush1.msra.mxu0 0.0
        %325 = vmatprep.subr.mxu0 0.0
        %326 = vmatpush1.msra.mxu0 0.0
        %327 = vmatprep.mubr.f32.mxu0 0.0
        %328 = vmatmul.mubr.f32.gmra.mrb[0].mxu0 %v236
        %v329 = vpop.f32.mrb[0].mxu0
        %v330 = vadd.f32 0.0, %v329
        %v331 = vpop.f32.mrb[0].mxu0
        %332 = vmatprep.mubr.f32.mxu0 0.0
        %333 = vmatmul.mubr.f32.gmra.mrb[0].mxu0 %v239
        %v334 = vpop.f32.mrb[0].mxu0
        %v335 = vadd.f32 0.0, %v334
        %v336 = vpop.f32.mrb[0].mxu0
        %337 = vmatprep.mubr.f32.mxu0 0.0
        %338 = vmatmul.mubr.f32.gmra.mrb[0].mxu0 %v242
        %v339 = vpop.f32.mrb[0].mxu0
        %v340 = vadd.f32 0.0, %v339
        %v341 = vpop.f32.mrb[0].mxu0
        %342 = vmatprep.mubr.f32.mxu0 0.0
        %343 = vmatmul.mubr.f32.gmra.mrb[0].mxu0 %v245
        %v344 = vpop.f32.mrb[0].mxu0
        %v345 = vadd.f32 0.0, %v344
        %v346 = vpop.f32.mrb[0].mxu0
        %347 = vmatprep.mubr.f32.mxu0 0.0
        %348 = vmatmul.mubr.f32.gmra.mrb[0].mxu0 %v248
        %v349 = vpop.f32.mrb[0].mxu0
        %v350 = vadd.f32 0.0, %v349
        %v351 = vpop.f32.mrb[0].mxu0
        %352 = vmatprep.mubr.f32.mxu0 0.0
        %353 = vmatmul.mubr.f32.gmra.mrb[0].mxu0 %v251
        %v354 = vpop.f32.mrb[0].mxu0
        %v355 = vadd.f32 0.0, %v354
        %v356 = vpop.f32.mrb[0].mxu0
        %357 = vmatprep.mubr.f32.mxu0 0.0
        %358 = vmatmul.mubr.f32.gmra.mrb[0].mxu0 %v254
        %v359 = vpop.f32.mrb[0].mxu0
        %v360 = vadd.f32 0.0, %v359
        %v361 = vpop.f32.mrb[0].mxu0
        %362 = vmatprep.mubr.f32.mxu0 0.0
        %363 = vmatmul.mubr.f32.gmra.mrb[0].mxu0 %v257
        %v364 = vpop.f32.mrb[0].mxu0
        %v365 = vadd.f32 0.0, %v364
        %v366 = vpop.f32.mrb[0].mxu0
        %367 = vdwg.mxu0
        %v369 = vsel %vm234, %v214, 0
        %v372 = vsel %vm234, %v215, 0
        %v375 = vsel %vm234, %v216, 0
        %v378 = vsel %vm234, %v217, 0
        %v381 = vsel %vm234, %v218, 0
        %v384 = vsel %vm234, %v219, 0
        %v387 = vsel %vm234, %v220, 0
        %v390 = vsel %vm234, %v221, 0
        %v393 = vsel %vm259, %v222, 0
        %395 = vmatprep.subr.mxu0 0.0
        %396 = vmatpush1.msra.mxu0 %v393
        %397 = vmatprep.subr.mxu0 0.0
        %398 = vmatpush1.msra.mxu0 0.0
        %399 = vmatprep.subr.mxu0 0.0
        %400 = vmatpush1.msra.mxu0 0.0
        %401 = vmatprep.subr.mxu0 0.0
        %402 = vmatpush1.msra.mxu0 0.0
        %403 = vmatprep.subr.mxu0 0.0
        %404 = vmatpush1.msra.mxu0 0.0
        %405 = vmatprep.subr.mxu0 0.0
        %406 = vmatpush1.msra.mxu0 0.0
        %407 = vmatprep.subr.mxu0 0.0
        %408 = vmatpush1.msra.mxu0 0.0
        %409 = vmatprep.subr.mxu0 0.0
        %410 = vmatpush1.msra.mxu0 0.0
        %411 = vmatprep.subr.mxu0 0.0
        %412 = vmatpush1.msra.mxu0 0.0
        %413 = vmatprep.subr.mxu0 0.0
        %414 = vmatpush1.msra.mxu0 0.0
        %415 = vmatprep.subr.mxu0 0.0
        %416 = vmatpush1.msra.mxu0 0.0
        %417 = vmatprep.subr.mxu0 0.0
        %418 = vmatpush1.msra.mxu0 0.0
        %419 = vmatprep.subr.mxu0 0.0
        %420 = vmatpush1.msra.mxu0 0.0
        %421 = vmatprep.subr.mxu0 0.0
        %422 = vmatpush1.msra.mxu0 0.0
        %423 = vmatprep.subr.mxu0 0.0
        %424 = vmatpush1.msra.mxu0 0.0
        %425 = vmatprep.subr.mxu0 0.0
        %426 = vmatpush1.msra.mxu0 0.0
        %427 = vmatprep.subr.mxu0 0.0
        %428 = vmatpush1.msra.mxu0 0.0
        %429 = vmatprep.subr.mxu0 0.0
        %430 = vmatpush1.msra.mxu0 0.0
        %431 = vmatprep.subr.mxu0 0.0
        %432 = vmatpush1.msra.mxu0 0.0
        %433 = vmatprep.subr.mxu0 0.0
        %434 = vmatpush1.msra.mxu0 0.0
        %435 = vmatprep.subr.mxu0 0.0
        %436 = vmatpush1.msra.mxu0 0.0
        %437 = vmatprep.subr.mxu0 0.0
        %438 = vmatpush1.msra.mxu0 0.0
        %439 = vmatprep.subr.mxu0 0.0
        %440 = vmatpush1.msra.mxu0 0.0
        %441 = vmatprep.subr.mxu0 0.0
        %442 = vmatpush1.msra.mxu0 0.0
        %443 = vmatprep.subr.mxu0 0.0
        %444 = vmatpush1.msra.mxu0 0.0
        %445 = vmatprep.subr.mxu0 0.0
        %446 = vmatpush1.msra.mxu0 0.0
        %447 = vmatprep.subr.mxu0 0.0
        %448 = vmatpush1.msra.mxu0 0.0
        %449 = vmatprep.subr.mxu0 0.0
        %450 = vmatpush1.msra.mxu0 0.0
        %451 = vmatprep.subr.mxu0 0.0
        %452 = vmatpush1.msra.mxu0 0.0
        %453 = vmatprep.subr.mxu0 0.0
        %454 = vmatpush1.msra.mxu0 0.0
        %455 = vmatprep.subr.mxu0 0.0
        %456 = vmatpush1.msra.mxu0 0.0
        %457 = vmatprep.subr.mxu0 0.0
        %458 = vmatpush1.msra.mxu0 0.0
        %459 = vmatprep.mubr.f32.mxu0 0.0
        %460 = vmatmul.mubr.f32.gmra.mrb[0].mxu0 %v369
        %v461 = vpop.f32.mrb[0].mxu0
        %v462 = vadd.f32 %v330, %v461
        %v463 = vpop.f32.mrb[0].mxu0
        %464 = vmatprep.mubr.f32.mxu0 0.0
        %465 = vmatmul.mubr.f32.gmra.mrb[0].mxu0 %v372
        %v466 = vpop.f32.mrb[0].mxu0
        %v467 = vadd.f32 %v335, %v466
        %v468 = vpop.f32.mrb[0].mxu0
        %469 = vmatprep.mubr.f32.mxu0 0.0
        %470 = vmatmul.mubr.f32.gmra.mrb[0].mxu0 %v375
        %v471 = vpop.f32.mrb[0].mxu0
        %v472 = vadd.f32 %v340, %v471
        %v473 = vpop.f32.mrb[0].mxu0
        %474 = vmatprep.mubr.f32.mxu0 0.0
        %475 = vmatmul.mubr.f32.gmra.mrb[0].mxu0 %v378
        %v476 = vpop.f32.mrb[0].mxu0
        %v477 = vadd.f32 %v345, %v476
        %v478 = vpop.f32.mrb[0].mxu0
        %479 = vmatprep.mubr.f32.mxu0 0.0
        %480 = vmatmul.mubr.f32.gmra.mrb[0].mxu0 %v381
        %v481 = vpop.f32.mrb[0].mxu0
        %v482 = vadd.f32 %v350, %v481
        %v483 = vpop.f32.mrb[0].mxu0
        %484 = vmatprep.mubr.f32.mxu0 0.0
        %485 = vmatmul.mubr.f32.gmra.mrb[0].mxu0 %v384
        %v486 = vpop.f32.mrb[0].mxu0
        %v487 = vadd.f32 %v355, %v486
        %v488 = vpop.f32.mrb[0].mxu0
        %489 = vmatprep.mubr.f32.mxu0 0.0
        %490 = vmatmul.mubr.f32.gmra.mrb[0].mxu0 %v387
        %v491 = vpop.f32.mrb[0].mxu0
        %v492 = vadd.f32 %v360, %v491
        %v493 = vpop.f32.mrb[0].mxu0
        %494 = vmatprep.mubr.f32.mxu0 0.0
        %495 = vmatmul.mubr.f32.gmra.mrb[0].mxu0 %v390
        %v496 = vpop.f32.mrb[0].mxu0
        %v497 = vadd.f32 %v365, %v496
        %v498 = vpop.f32.mrb[0].mxu0
        %499 = vdwg.mxu0
        %v500 = vld [vmem:[%s206 + $0x1] sm:$0xff]
        %v501 = vld [vmem:[%s206 + $0x11] sm:$0xff]
        %v502 = vld [vmem:[%s206 + $0x21] sm:$0xff]
        %v503 = vld [vmem:[%s206 + $0x31] sm:$0xff]
        %v504 = vld [vmem:[%s206 + $0x41] sm:$0xff]
        %v505 = vld [vmem:[%s206 + $0x51] sm:$0xff]
        %v506 = vld [vmem:[%s206 + $0x61] sm:$0xff]
        %v507 = vld [vmem:[%s206 + $0x71] sm:$0xff]
        %s508 = scalar_lea.vmem %s210, 8
        %v509 = vld [vmem:[%s508] sm:$0xf]
        %v511 = vsel %vm234, %v500, 0
        %v514 = vsel %vm234, %v501, 0
        %v517 = vsel %vm234, %v502, 0
        %v520 = vsel %vm234, %v503, 0
        %v523 = vsel %vm234, %v504, 0
        %v526 = vsel %vm234, %v505, 0
        %v529 = vsel %vm234, %v506, 0
        %v532 = vsel %vm234, %v507, 0
        %v535 = vsel %vm259, %v509, 0
        %537 = vmatprep.subr.mxu0 0.0
        %538 = vmatpush1.msra.mxu0 %v535
        %539 = vmatprep.subr.mxu0 0.0
        %540 = vmatpush1.msra.mxu0 0.0
        %541 = vmatprep.subr.mxu0 0.0
        %542 = vmatpush1.msra.mxu0 0.0
        %543 = vmatprep.subr.mxu0 0.0
        %544 = vmatpush1.msra.mxu0 0.0
        %545 = vmatprep.subr.mxu0 0.0
        %546 = vmatpush1.msra.mxu0 0.0
        %547 = vmatprep.subr.mxu0 0.0
        %548 = vmatpush1.msra.mxu0 0.0
        %549 = vmatprep.subr.mxu0 0.0
        %550 = vmatpush1.msra.mxu0 0.0
        %551 = vmatprep.subr.mxu0 0.0
        %552 = vmatpush1.msra.mxu0 0.0
        %553 = vmatprep.subr.mxu0 0.0
        %554 = vmatpush1.msra.mxu0 0.0
        %555 = vmatprep.subr.mxu0 0.0
        %556 = vmatpush1.msra.mxu0 0.0
        %557 = vmatprep.subr.mxu0 0.0
        %558 = vmatpush1.msra.mxu0 0.0
        %559 = vmatprep.subr.mxu0 0.0
        %560 = vmatpush1.msra.mxu0 0.0
        %561 = vmatprep.subr.mxu0 0.0
        %562 = vmatpush1.msra.mxu0 0.0
        %563 = vmatprep.subr.mxu0 0.0
        %564 = vmatpush1.msra.mxu0 0.0
        %565 = vmatprep.subr.mxu0 0.0
        %566 = vmatpush1.msra.mxu0 0.0
        %567 = vmatprep.subr.mxu0 0.0
        %568 = vmatpush1.msra.mxu0 0.0
        %569 = vmatprep.subr.mxu0 0.0
        %570 = vmatpush1.msra.mxu0 0.0
        %571 = vmatprep.subr.mxu0 0.0
        %572 = vmatpush1.msra.mxu0 0.0
        %573 = vmatprep.subr.mxu0 0.0
        %574 = vmatpush1.msra.mxu0 0.0
        %575 = vmatprep.subr.mxu0 0.0
        %576 = vmatpush1.msra.mxu0 0.0
        %577 = vmatprep.subr.mxu0 0.0
        %578 = vmatpush1.msra.mxu0 0.0
        %579 = vmatprep.subr.mxu0 0.0
        %580 = vmatpush1.msra.mxu0 0.0
        %581 = vmatprep.subr.mxu0 0.0
        %582 = vmatpush1.msra.mxu0 0.0
        %583 = vmatprep.subr.mxu0 0.0
        %584 = vmatpush1.msra.mxu0 0.0
        %585 = vmatprep.subr.mxu0 0.0
        %586 = vmatpush1.msra.mxu0 0.0
        %587 = vmatprep.subr.mxu0 0.0
        %588 = vmatpush1.msra.mxu0 0.0
        %589 = vmatprep.subr.mxu0 0.0
        %590 = vmatpush1.msra.mxu0 0.0
        %591 = vmatprep.subr.mxu0 0.0
        %592 = vmatpush1.msra.mxu0 0.0
        %593 = vmatprep.subr.mxu0 0.0
        %594 = vmatpush1.msra.mxu0 0.0
        %595 = vmatprep.subr.mxu0 0.0
        %596 = vmatpush1.msra.mxu0 0.0
        %597 = vmatprep.subr.mxu0 0.0
        %598 = vmatpush1.msra.mxu0 0.0
        %599 = vmatprep.subr.mxu0 0.0
        %600 = vmatpush1.msra.mxu0 0.0
        %601 = vmatprep.mubr.f32.mxu0 0.0
        %602 = vmatmul.mubr.f32.gmra.mrb[0].mxu0 %v511
        %v603 = vpop.f32.mrb[0].mxu0
        %v604 = vadd.f32 0.0, %v603
        %v605 = vpop.f32.mrb[0].mxu0
        %606 = vmatprep.mubr.f32.mxu0 0.0
        %607 = vmatmul.mubr.f32.gmra.mrb[0].mxu0 %v514
        %v608 = vpop.f32.mrb[0].mxu0
        %v609 = vadd.f32 0.0, %v608
        %v610 = vpop.f32.mrb[0].mxu0
        %611 = vmatprep.mubr.f32.mxu0 0.0
        %612 = vmatmul.mubr.f32.gmra.mrb[0].mxu0 %v517
        %v613 = vpop.f32.mrb[0].mxu0
        %v614 = vadd.f32 0.0, %v613
        %v615 = vpop.f32.mrb[0].mxu0
        %616 = vmatprep.mubr.f32.mxu0 0.0
        %617 = vmatmul.mubr.f32.gmra.mrb[0].mxu0 %v520
        %v618 = vpop.f32.mrb[0].mxu0
        %v619 = vadd.f32 0.0, %v618
        %v620 = vpop.f32.mrb[0].mxu0
        %621 = vmatprep.mubr.f32.mxu0 0.0
        %622 = vmatmul.mubr.f32.gmra.mrb[0].mxu0 %v523
        %v623 = vpop.f32.mrb[0].mxu0
        %v624 = vadd.f32 0.0, %v623
        %v625 = vpop.f32.mrb[0].mxu0
        %626 = vmatprep.mubr.f32.mxu0 0.0
        %627 = vmatmul.mubr.f32.gmra.mrb[0].mxu0 %v526
        %v628 = vpop.f32.mrb[0].mxu0
        %v629 = vadd.f32 0.0, %v628
        %v630 = vpop.f32.mrb[0].mxu0
        %631 = vmatprep.mubr.f32.mxu0 0.0
        %632 = vmatmul.mubr.f32.gmra.mrb[0].mxu0 %v529
        %v633 = vpop.f32.mrb[0].mxu0
        %v634 = vadd.f32 0.0, %v633
        %v635 = vpop.f32.mrb[0].mxu0
        %636 = vmatprep.mubr.f32.mxu0 0.0
        %637 = vmatmul.mubr.f32.gmra.mrb[0].mxu0 %v532
        %v638 = vpop.f32.mrb[0].mxu0
        %v639 = vadd.f32 0.0, %v638
        %v640 = vpop.f32.mrb[0].mxu0
        %641 = vdwg.mxu0
        %v642 = vadd.f32 %v462, %v604
        %v643 = vadd.f32 %v467, %v609
        %v644 = vadd.f32 %v472, %v614
        %v645 = vadd.f32 %v477, %v619
        %v646 = vadd.f32 %v482, %v624
        %v647 = vadd.f32 %v487, %v629
        %v648 = vadd.f32 %v492, %v634
        %v649 = vadd.f32 %v497, %v639
        %s650 = scalar_lea.vmem %s206, 288
        %v651 = vld [vmem:[%s650] sm:$0xff]
        %v652 = vld [vmem:[%s650 + $0x10] sm:$0xff]
        %v653 = vld [vmem:[%s650 + $0x20] sm:$0xff]
        %v654 = vld [vmem:[%s650 + $0x30] sm:$0xff]
        %v655 = vld [vmem:[%s650 + $0x40] sm:$0xff]
        %v656 = vld [vmem:[%s650 + $0x50] sm:$0xff]
        %v657 = vld [vmem:[%s650 + $0x60] sm:$0xff]
        %v658 = vld [vmem:[%s650 + $0x70] sm:$0xff]
        %s659 = scalar_lea.vmem %s210, 12
        %v660 = vld [vmem:[%s659] sm:$0xf]
        %v662 = vsel %vm234, %v651, 0
        %v665 = vsel %vm234, %v652, 0
        %v668 = vsel %vm234, %v653, 0
        %v671 = vsel %vm234, %v654, 0
        %v674 = vsel %vm234, %v655, 0
        %v677 = vsel %vm234, %v656, 0
        %v680 = vsel %vm234, %v657, 0
        %v683 = vsel %vm234, %v658, 0
        %v686 = vsel %vm259, %v660, 0
        %688 = vmatprep.subr.mxu0 0.0
        %689 = vmatpush1.msra.mxu0 %v686
        %690 = vmatprep.subr.mxu0 0.0
        %691 = vmatpush1.msra.mxu0 0.0
        %692 = vmatprep.subr.mxu0 0.0
        %693 = vmatpush1.msra.mxu0 0.0
        %694 = vmatprep.subr.mxu0 0.0
        %695 = vmatpush1.msra.mxu0 0.0
        %696 = vmatprep.subr.mxu0 0.0
        %697 = vmatpush1.msra.mxu0 0.0
        %698 = vmatprep.subr.mxu0 0.0
        %699 = vmatpush1.msra.mxu0 0.0
        %700 = vmatprep.subr.mxu0 0.0
        %701 = vmatpush1.msra.mxu0 0.0
        %702 = vmatprep.subr.mxu0 0.0
        %703 = vmatpush1.msra.mxu0 0.0
        %704 = vmatprep.subr.mxu0 0.0
        %705 = vmatpush1.msra.mxu0 0.0
        %706 = vmatprep.subr.mxu0 0.0
        %707 = vmatpush1.msra.mxu0 0.0
        %708 = vmatprep.subr.mxu0 0.0
        %709 = vmatpush1.msra.mxu0 0.0
        %710 = vmatprep.subr.mxu0 0.0
        %711 = vmatpush1.msra.mxu0 0.0
        %712 = vmatprep.subr.mxu0 0.0
        %713 = vmatpush1.msra.mxu0 0.0
        %714 = vmatprep.subr.mxu0 0.0
        %715 = vmatpush1.msra.mxu0 0.0
        %716 = vmatprep.subr.mxu0 0.0
        %717 = vmatpush1.msra.mxu0 0.0
        %718 = vmatprep.subr.mxu0 0.0
        %719 = vmatpush1.msra.mxu0 0.0
        %720 = vmatprep.subr.mxu0 0.0
        %721 = vmatpush1.msra.mxu0 0.0
        %722 = vmatprep.subr.mxu0 0.0
        %723 = vmatpush1.msra.mxu0 0.0
        %724 = vmatprep.subr.mxu0 0.0
        %725 = vmatpush1.msra.mxu0 0.0
        %726 = vmatprep.subr.mxu0 0.0
        %727 = vmatpush1.msra.mxu0 0.0
        %728 = vmatprep.subr.mxu0 0.0
        %729 = vmatpush1.msra.mxu0 0.0
        %730 = vmatprep.subr.mxu0 0.0
        %731 = vmatpush1.msra.mxu0 0.0
        %732 = vmatprep.subr.mxu0 0.0
        %733 = vmatpush1.msra.mxu0 0.0
        %734 = vmatprep.subr.mxu0 0.0
        %735 = vmatpush1.msra.mxu0 0.0
        %736 = vmatprep.subr.mxu0 0.0
        %737 = vmatpush1.msra.mxu0 0.0
        %738 = vmatprep.subr.mxu0 0.0
        %739 = vmatpush1.msra.mxu0 0.0
        %740 = vmatprep.subr.mxu0 0.0
        %741 = vmatpush1.msra.mxu0 0.0
        %742 = vmatprep.subr.mxu0 0.0
        %743 = vmatpush1.msra.mxu0 0.0
        %744 = vmatprep.subr.mxu0 0.0
        %745 = vmatpush1.msra.mxu0 0.0
        %746 = vmatprep.subr.mxu0 0.0
        %747 = vmatpush1.msra.mxu0 0.0
        %748 = vmatprep.subr.mxu0 0.0
        %749 = vmatpush1.msra.mxu0 0.0
        %750 = vmatprep.subr.mxu0 0.0
        %751 = vmatpush1.msra.mxu0 0.0
        %752 = vmatprep.mubr.f32.mxu0 0.0
        %753 = vmatmul.mubr.f32.gmra.mrb[0].mxu0 %v662
        %v754 = vpop.f32.mrb[0].mxu0
        %v755 = vadd.f32 0.0, %v754
        %v756 = vpop.f32.mrb[0].mxu0
        %757 = vmatprep.mubr.f32.mxu0 0.0
        %758 = vmatmul.mubr.f32.gmra.mrb[0].mxu0 %v665
        %v759 = vpop.f32.mrb[0].mxu0
        %v760 = vadd.f32 0.0, %v759
        %v761 = vpop.f32.mrb[0].mxu0
        %762 = vmatprep.mubr.f32.mxu0 0.0
        %763 = vmatmul.mubr.f32.gmra.mrb[0].mxu0 %v668
        %v764 = vpop.f32.mrb[0].mxu0
        %v765 = vadd.f32 0.0, %v764
        %v766 = vpop.f32.mrb[0].mxu0
        %767 = vmatprep.mubr.f32.mxu0 0.0
        %768 = vmatmul.mubr.f32.gmra.mrb[0].mxu0 %v671
        %v769 = vpop.f32.mrb[0].mxu0
        %v770 = vadd.f32 0.0, %v769
        %v771 = vpop.f32.mrb[0].mxu0
        %772 = vmatprep.mubr.f32.mxu0 0.0
        %773 = vmatmul.mubr.f32.gmra.mrb[0].mxu0 %v674
        %v774 = vpop.f32.mrb[0].mxu0
        %v775 = vadd.f32 0.0, %v774
        %v776 = vpop.f32.mrb[0].mxu0
        %777 = vmatprep.mubr.f32.mxu0 0.0
        %778 = vmatmul.mubr.f32.gmra.mrb[0].mxu0 %v677
        %v779 = vpop.f32.mrb[0].mxu0
        %v780 = vadd.f32 0.0, %v779
        %v781 = vpop.f32.mrb[0].mxu0
        %782 = vmatprep.mubr.f32.mxu0 0.0
        %783 = vmatmul.mubr.f32.gmra.mrb[0].mxu0 %v680
        %v784 = vpop.f32.mrb[0].mxu0
        %v785 = vadd.f32 0.0, %v784
        %v786 = vpop.f32.mrb[0].mxu0
        %787 = vmatprep.mubr.f32.mxu0 0.0
        %788 = vmatmul.mubr.f32.gmra.mrb[0].mxu0 %v683
        %v789 = vpop.f32.mrb[0].mxu0
        %v790 = vadd.f32 0.0, %v789
        %v791 = vpop.f32.mrb[0].mxu0
        %792 = vdwg.mxu0
        %v793 = vadd.f32 %v642, %v755
        %v794 = vadd.f32 %v643, %v760
        %v795 = vadd.f32 %v644, %v765
        %v796 = vadd.f32 %v645, %v770
        %v797 = vadd.f32 %v646, %v775
        %v798 = vadd.f32 %v647, %v780
        %v799 = vadd.f32 %v648, %v785
        %v800 = vadd.f32 %v649, %v790
        %s801 = scalar_lea.vmem %s206, 432
        %v802 = vld [vmem:[%s801] sm:$0xff]
        %v803 = vld [vmem:[%s801 + $0x10] sm:$0xff]
        %v804 = vld [vmem:[%s801 + $0x20] sm:$0xff]
        %v805 = vld [vmem:[%s801 + $0x30] sm:$0xff]
        %v806 = vld [vmem:[%s801 + $0x40] sm:$0xff]
        %v807 = vld [vmem:[%s801 + $0x50] sm:$0xff]
        %v808 = vld [vmem:[%s801 + $0x60] sm:$0xff]
        %v809 = vld [vmem:[%s801 + $0x70] sm:$0xff]
        %s810 = scalar_lea.vmem %s210, 16
        %v811 = vld [vmem:[%s810] sm:$0xf]
        %v813 = vsel %vm234, %v802, 0
        %v816 = vsel %vm234, %v803, 0
        %v819 = vsel %vm234, %v804, 0
        %v822 = vsel %vm234, %v805, 0
        %v825 = vsel %vm234, %v806, 0
        %v828 = vsel %vm234, %v807, 0
        %v831 = vsel %vm234, %v808, 0
        %v834 = vsel %vm234, %v809, 0
        %v837 = vsel %vm259, %v811, 0
        %839 = vmatprep.subr.mxu0 0.0
        %840 = vmatpush1.msra.mxu0 %v837
        %841 = vmatprep.subr.mxu0 0.0
        %842 = vmatpush1.msra.mxu0 0.0
        %843 = vmatprep.subr.mxu0 0.0
        %844 = vmatpush1.msra.mxu0 0.0
        %845 = vmatprep.subr.mxu0 0.0
        %846 = vmatpush1.msra.mxu0 0.0
        %847 = vmatprep.subr.mxu0 0.0
        %848 = vmatpush1.msra.mxu0 0.0
        %849 = vmatprep.subr.mxu0 0.0
        %850 = vmatpush1.msra.mxu0 0.0
        %851 = vmatprep.subr.mxu0 0.0
        %852 = vmatpush1.msra.mxu0 0.0
        %853 = vmatprep.subr.mxu0 0.0
        %854 = vmatpush1.msra.mxu0 0.0
        %855 = vmatprep.subr.mxu0 0.0
        %856 = vmatpush1.msra.mxu0 0.0
        %857 = vmatprep.subr.mxu0 0.0
        %858 = vmatpush1.msra.mxu0 0.0
        %859 = vmatprep.subr.mxu0 0.0
        %860 = vmatpush1.msra.mxu0 0.0
        %861 = vmatprep.subr.mxu0 0.0
        %862 = vmatpush1.msra.mxu0 0.0
        %863 = vmatprep.subr.mxu0 0.0
        %864 = vmatpush1.msra.mxu0 0.0
        %865 = vmatprep.subr.mxu0 0.0
        %866 = vmatpush1.msra.mxu0 0.0
        %867 = vmatprep.subr.mxu0 0.0
        %868 = vmatpush1.msra.mxu0 0.0
        %869 = vmatprep.subr.mxu0 0.0
        %870 = vmatpush1.msra.mxu0 0.0
        %871 = vmatprep.subr.mxu0 0.0
        %872 = vmatpush1.msra.mxu0 0.0
        %873 = vmatprep.subr.mxu0 0.0
        %874 = vmatpush1.msra.mxu0 0.0
        %875 = vmatprep.subr.mxu0 0.0
        %876 = vmatpush1.msra.mxu0 0.0
        %877 = vmatprep.subr.mxu0 0.0
        %878 = vmatpush1.msra.mxu0 0.0
        %879 = vmatprep.subr.mxu0 0.0
        %880 = vmatpush1.msra.mxu0 0.0
        %881 = vmatprep.subr.mxu0 0.0
        %882 = vmatpush1.msra.mxu0 0.0
        %883 = vmatprep.subr.mxu0 0.0
        %884 = vmatpush1.msra.mxu0 0.0
        %885 = vmatprep.subr.mxu0 0.0
        %886 = vmatpush1.msra.mxu0 0.0
        %887 = vmatprep.subr.mxu0 0.0
        %888 = vmatpush1.msra.mxu0 0.0
        %889 = vmatprep.subr.mxu0 0.0
        %890 = vmatpush1.msra.mxu0 0.0
        %891 = vmatprep.subr.mxu0 0.0
        %892 = vmatpush1.msra.mxu0 0.0
        %893 = vmatprep.subr.mxu0 0.0
        %894 = vmatpush1.msra.mxu0 0.0
        %895 = vmatprep.subr.mxu0 0.0
        %896 = vmatpush1.msra.mxu0 0.0
        %897 = vmatprep.subr.mxu0 0.0
        %898 = vmatpush1.msra.mxu0 0.0
        %899 = vmatprep.subr.mxu0 0.0
        %900 = vmatpush1.msra.mxu0 0.0
        %901 = vmatprep.subr.mxu0 0.0
        %902 = vmatpush1.msra.mxu0 0.0
        %903 = vmatprep.mubr.f32.mxu0 0.0
        %904 = vmatmul.mubr.f32.gmra.mrb[0].mxu0 %v813
        %v905 = vpop.f32.mrb[0].mxu0
        %v906 = vadd.f32 0.0, %v905
        %v907 = vpop.f32.mrb[0].mxu0
        %908 = vmatprep.mubr.f32.mxu0 0.0
        %909 = vmatmul.mubr.f32.gmra.mrb[0].mxu0 %v816
        %v910 = vpop.f32.mrb[0].mxu0
        %v911 = vadd.f32 0.0, %v910
        %v912 = vpop.f32.mrb[0].mxu0
        %913 = vmatprep.mubr.f32.mxu0 0.0
        %914 = vmatmul.mubr.f32.gmra.mrb[0].mxu0 %v819
        %v915 = vpop.f32.mrb[0].mxu0
        %v916 = vadd.f32 0.0, %v915
        %v917 = vpop.f32.mrb[0].mxu0
        %918 = vmatprep.mubr.f32.mxu0 0.0
        %919 = vmatmul.mubr.f32.gmra.mrb[0].mxu0 %v822
        %v920 = vpop.f32.mrb[0].mxu0
        %v921 = vadd.f32 0.0, %v920
        %v922 = vpop.f32.mrb[0].mxu0
        %923 = vmatprep.mubr.f32.mxu0 0.0
        %924 = vmatmul.mubr.f32.gmra.mrb[0].mxu0 %v825
        %v925 = vpop.f32.mrb[0].mxu0
        %v926 = vadd.f32 0.0, %v925
        %v927 = vpop.f32.mrb[0].mxu0
        %928 = vmatprep.mubr.f32.mxu0 0.0
        %929 = vmatmul.mubr.f32.gmra.mrb[0].mxu0 %v828
        %v930 = vpop.f32.mrb[0].mxu0
        %v931 = vadd.f32 0.0, %v930
        %v932 = vpop.f32.mrb[0].mxu0
        %933 = vmatprep.mubr.f32.mxu0 0.0
        %934 = vmatmul.mubr.f32.gmra.mrb[0].mxu0 %v831
        %v935 = vpop.f32.mrb[0].mxu0
        %v936 = vadd.f32 0.0, %v935
        %v937 = vpop.f32.mrb[0].mxu0
        %938 = vmatprep.mubr.f32.mxu0 0.0
        %939 = vmatmul.mubr.f32.gmra.mrb[0].mxu0 %v834
        %v940 = vpop.f32.mrb[0].mxu0
        %v941 = vadd.f32 0.0, %v940
        %v942 = vpop.f32.mrb[0].mxu0
        %943 = vdwg.mxu0
        %v944 = vadd.f32 %v793, %v906
        %v945 = vadd.f32 %v794, %v911
        %v946 = vadd.f32 %v795, %v916
        %v947 = vadd.f32 %v796, %v921
        %v948 = vadd.f32 %v797, %v926
        %v949 = vadd.f32 %v798, %v931
        %v950 = vadd.f32 %v799, %v936
        %v951 = vadd.f32 %v800, %v941
        %v952 = vld [vmem:[%s650 + $0x1] sm:$0xff]
        %v953 = vld [vmem:[%s650 + $0x11] sm:$0xff]
        %v954 = vld [vmem:[%s650 + $0x21] sm:$0xff]
        %v955 = vld [vmem:[%s650 + $0x31] sm:$0xff]
        %v956 = vld [vmem:[%s650 + $0x41] sm:$0xff]
        %v957 = vld [vmem:[%s650 + $0x51] sm:$0xff]
        %v958 = vld [vmem:[%s650 + $0x61] sm:$0xff]
        %v959 = vld [vmem:[%s650 + $0x71] sm:$0xff]
        %s960 = scalar_lea.vmem %s210, 20
        %v961 = vld [vmem:[%s960] sm:$0xf]
        %v963 = vsel %vm234, %v952, 0
        %v966 = vsel %vm234, %v953, 0
        %v969 = vsel %vm234, %v954, 0
        %v972 = vsel %vm234, %v955, 0
        %v975 = vsel %vm234, %v956, 0
        %v978 = vsel %vm234, %v957, 0
        %v981 = vsel %vm234, %v958, 0
        %v984 = vsel %vm234, %v959, 0
        %v987 = vsel %vm259, %v961, 0
        %989 = vmatprep.subr.mxu0 0.0
        %990 = vmatpush1.msra.mxu0 %v987
        %991 = vmatprep.subr.mxu0 0.0
        %992 = vmatpush1.msra.mxu0 0.0
        %993 = vmatprep.subr.mxu0 0.0
        %994 = vmatpush1.msra.mxu0 0.0
        %995 = vmatprep.subr.mxu0 0.0
        %996 = vmatpush1.msra.mxu0 0.0
        %997 = vmatprep.subr.mxu0 0.0
        %998 = vmatpush1.msra.mxu0 0.0
        %999 = vmatprep.subr.mxu0 0.0
        %1000 = vmatpush1.msra.mxu0 0.0
        %1001 = vmatprep.subr.mxu0 0.0
        %1002 = vmatpush1.msra.mxu0 0.0
        %1003 = vmatprep.subr.mxu0 0.0
        %1004 = vmatpush1.msra.mxu0 0.0
        %1005 = vmatprep.subr.mxu0 0.0
        %1006 = vmatpush1.msra.mxu0 0.0
        %1007 = vmatprep.subr.mxu0 0.0
        %1008 = vmatpush1.msra.mxu0 0.0
        %1009 = vmatprep.subr.mxu0 0.0
        %1010 = vmatpush1.msra.mxu0 0.0
        %1011 = vmatprep.subr.mxu0 0.0
        %1012 = vmatpush1.msra.mxu0 0.0
        %1013 = vmatprep.subr.mxu0 0.0
        %1014 = vmatpush1.msra.mxu0 0.0
        %1015 = vmatprep.subr.mxu0 0.0
        %1016 = vmatpush1.msra.mxu0 0.0
        %1017 = vmatprep.subr.mxu0 0.0
        %1018 = vmatpush1.msra.mxu0 0.0
        %1019 = vmatprep.subr.mxu0 0.0
        %1020 = vmatpush1.msra.mxu0 0.0
        %1021 = vmatprep.subr.mxu0 0.0
        %1022 = vmatpush1.msra.mxu0 0.0
        %1023 = vmatprep.subr.mxu0 0.0
        %1024 = vmatpush1.msra.mxu0 0.0
        %1025 = vmatprep.subr.mxu0 0.0
        %1026 = vmatpush1.msra.mxu0 0.0
        %1027 = vmatprep.subr.mxu0 0.0
        %1028 = vmatpush1.msra.mxu0 0.0
        %1029 = vmatprep.subr.mxu0 0.0
        %1030 = vmatpush1.msra.mxu0 0.0
        %1031 = vmatprep.subr.mxu0 0.0
        %1032 = vmatpush1.msra.mxu0 0.0
        %1033 = vmatprep.subr.mxu0 0.0
        %1034 = vmatpush1.msra.mxu0 0.0
        %1035 = vmatprep.subr.mxu0 0.0
        %1036 = vmatpush1.msra.mxu0 0.0
        %1037 = vmatprep.subr.mxu0 0.0
        %1038 = vmatpush1.msra.mxu0 0.0
        %1039 = vmatprep.subr.mxu0 0.0
        %1040 = vmatpush1.msra.mxu0 0.0
        %1041 = vmatprep.subr.mxu0 0.0
        %1042 = vmatpush1.msra.mxu0 0.0
        %1043 = vmatprep.subr.mxu0 0.0
        %1044 = vmatpush1.msra.mxu0 0.0
        %1045 = vmatprep.subr.mxu0 0.0
        %1046 = vmatpush1.msra.mxu0 0.0
        %1047 = vmatprep.subr.mxu0 0.0
        %1048 = vmatpush1.msra.mxu0 0.0
        %1049 = vmatprep.subr.mxu0 0.0
        %1050 = vmatpush1.msra.mxu0 0.0
        %1051 = vmatprep.subr.mxu0 0.0
        %1052 = vmatpush1.msra.mxu0 0.0
        %1053 = vmatprep.mubr.f32.mxu0 0.0
        %1054 = vmatmul.mubr.f32.gmra.mrb[0].mxu0 %v963
        %v1055 = vpop.f32.mrb[0].mxu0
        %v1056 = vadd.f32 0.0, %v1055
        %v1057 = vpop.f32.mrb[0].mxu0
        %1058 = vmatprep.mubr.f32.mxu0 0.0
        %1059 = vmatmul.mubr.f32.gmra.mrb[0].mxu0 %v966
        %v1060 = vpop.f32.mrb[0].mxu0
        %v1061 = vadd.f32 0.0, %v1060
        %v1062 = vpop.f32.mrb[0].mxu0
        %1063 = vmatprep.mubr.f32.mxu0 0.0
        %1064 = vmatmul.mubr.f32.gmra.mrb[0].mxu0 %v969
        %v1065 = vpop.f32.mrb[0].mxu0
        %v1066 = vadd.f32 0.0, %v1065
        %v1067 = vpop.f32.mrb[0].mxu0
        %1068 = vmatprep.mubr.f32.mxu0 0.0
        %1069 = vmatmul.mubr.f32.gmra.mrb[0].mxu0 %v972
        %v1070 = vpop.f32.mrb[0].mxu0
        %v1071 = vadd.f32 0.0, %v1070
        %v1072 = vpop.f32.mrb[0].mxu0
        %1073 = vmatprep.mubr.f32.mxu0 0.0
        %1074 = vmatmul.mubr.f32.gmra.mrb[0].mxu0 %v975
        %v1075 = vpop.f32.mrb[0].mxu0
        %v1076 = vadd.f32 0.0, %v1075
        %v1077 = vpop.f32.mrb[0].mxu0
        %1078 = vmatprep.mubr.f32.mxu0 0.0
        %1079 = vmatmul.mubr.f32.gmra.mrb[0].mxu0 %v978
        %v1080 = vpop.f32.mrb[0].mxu0
        %v1081 = vadd.f32 0.0, %v1080
        %v1082 = vpop.f32.mrb[0].mxu0
        %1083 = vmatprep.mubr.f32.mxu0 0.0
        %1084 = vmatmul.mubr.f32.gmra.mrb[0].mxu0 %v981
        %v1085 = vpop.f32.mrb[0].mxu0
        %v1086 = vadd.f32 0.0, %v1085
        %v1087 = vpop.f32.mrb[0].mxu0
        %1088 = vmatprep.mubr.f32.mxu0 0.0
        %1089 = vmatmul.mubr.f32.gmra.mrb[0].mxu0 %v984
        %v1090 = vpop.f32.mrb[0].mxu0
        %v1091 = vadd.f32 0.0, %v1090
        %v1092 = vpop.f32.mrb[0].mxu0
        %1093 = vdwg.mxu0
        %v1094 = vadd.f32 %v944, %v1056
        %v1095 = vadd.f32 %v945, %v1061
        %v1096 = vadd.f32 %v946, %v1066
        %v1097 = vadd.f32 %v947, %v1071
        %v1098 = vadd.f32 %v948, %v1076
        %v1099 = vadd.f32 %v949, %v1081
        %v1100 = vadd.f32 %v950, %v1086
        %v1101 = vadd.f32 %v951, %v1091
        %s1102 = scalar_lea.vmem %s206, 16
        %v1103 = vld [vmem:[%s1102] sm:$0xff]
        %v1104 = vld [vmem:[%s1102 + $0x10] sm:$0xff]
        %v1105 = vld [vmem:[%s1102 + $0x20] sm:$0xff]
        %v1106 = vld [vmem:[%s1102 + $0x30] sm:$0xff]
        %v1107 = vld [vmem:[%s1102 + $0x40] sm:$0xff]
        %v1108 = vld [vmem:[%s1102 + $0x50] sm:$0xff]
        %v1109 = vld [vmem:[%s1102 + $0x60] sm:$0xff]
        %v1110 = vld [vmem:[%s1102 + $0x70] sm:$0xff]
        %s1111 = scalar_lea.vmem %s210, 24
        %v1112 = vld [vmem:[%s1111] sm:$0xf]
        %v1114 = vsel %vm234, %v1103, 0
        %v1117 = vsel %vm234, %v1104, 0
        %v1120 = vsel %vm234, %v1105, 0
        %v1123 = vsel %vm234, %v1106, 0
        %v1126 = vsel %vm234, %v1107, 0
        %v1129 = vsel %vm234, %v1108, 0
        %v1132 = vsel %vm234, %v1109, 0
        %v1135 = vsel %vm234, %v1110, 0
        %v1138 = vsel %vm259, %v1112, 0
        %1140 = vmatprep.subr.mxu0 0.0
        %1141 = vmatpush1.msra.mxu0 %v1138
        %1142 = vmatprep.subr.mxu0 0.0
        %1143 = vmatpush1.msra.mxu0 0.0
        %1144 = vmatprep.subr.mxu0 0.0
        %1145 = vmatpush1.msra.mxu0 0.0
        %1146 = vmatprep.subr.mxu0 0.0
        %1147 = vmatpush1.msra.mxu0 0.0
        %1148 = vmatprep.subr.mxu0 0.0
        %1149 = vmatpush1.msra.mxu0 0.0
        %1150 = vmatprep.subr.mxu0 0.0
        %1151 = vmatpush1.msra.mxu0 0.0
        %1152 = vmatprep.subr.mxu0 0.0
        %1153 = vmatpush1.msra.mxu0 0.0
        %1154 = vmatprep.subr.mxu0 0.0
        %1155 = vmatpush1.msra.mxu0 0.0
        %1156 = vmatprep.subr.mxu0 0.0
        %1157 = vmatpush1.msra.mxu0 0.0
        %1158 = vmatprep.subr.mxu0 0.0
        %1159 = vmatpush1.msra.mxu0 0.0
        %1160 = vmatprep.subr.mxu0 0.0
        %1161 = vmatpush1.msra.mxu0 0.0
        %1162 = vmatprep.subr.mxu0 0.0
        %1163 = vmatpush1.msra.mxu0 0.0
        %1164 = vmatprep.subr.mxu0 0.0
        %1165 = vmatpush1.msra.mxu0 0.0
        %1166 = vmatprep.subr.mxu0 0.0
        %1167 = vmatpush1.msra.mxu0 0.0
        %1168 = vmatprep.subr.mxu0 0.0
        %1169 = vmatpush1.msra.mxu0 0.0
        %1170 = vmatprep.subr.mxu0 0.0
        %1171 = vmatpush1.msra.mxu0 0.0
        %1172 = vmatprep.subr.mxu0 0.0
        %1173 = vmatpush1.msra.mxu0 0.0
        %1174 = vmatprep.subr.mxu0 0.0
        %1175 = vmatpush1.msra.mxu0 0.0
        %1176 = vmatprep.subr.mxu0 0.0
        %1177 = vmatpush1.msra.mxu0 0.0
        %1178 = vmatprep.subr.mxu0 0.0
        %1179 = vmatpush1.msra.mxu0 0.0
        %1180 = vmatprep.subr.mxu0 0.0
        %1181 = vmatpush1.msra.mxu0 0.0
        %1182 = vmatprep.subr.mxu0 0.0
        %1183 = vmatpush1.msra.mxu0 0.0
        %1184 = vmatprep.subr.mxu0 0.0
        %1185 = vmatpush1.msra.mxu0 0.0
        %1186 = vmatprep.subr.mxu0 0.0
        %1187 = vmatpush1.msra.mxu0 0.0
        %1188 = vmatprep.subr.mxu0 0.0
        %1189 = vmatpush1.msra.mxu0 0.0
        %1190 = vmatprep.subr.mxu0 0.0
        %1191 = vmatpush1.msra.mxu0 0.0
        %1192 = vmatprep.subr.mxu0 0.0
        %1193 = vmatpush1.msra.mxu0 0.0
        %1194 = vmatprep.subr.mxu0 0.0
        %1195 = vmatpush1.msra.mxu0 0.0
        %1196 = vmatprep.subr.mxu0 0.0
        %1197 = vmatpush1.msra.mxu0 0.0
        %1198 = vmatprep.subr.mxu0 0.0
        %1199 = vmatpush1.msra.mxu0 0.0
        %1200 = vmatprep.subr.mxu0 0.0
        %1201 = vmatpush1.msra.mxu0 0.0
        %1202 = vmatprep.subr.mxu0 0.0
        %1203 = vmatpush1.msra.mxu0 0.0
        %1204 = vmatprep.mubr.f32.mxu0 0.0
        %1205 = vmatmul.mubr.f32.gmra.mrb[0].mxu0 %v1114
        %v1206 = vpop.f32.mrb[0].mxu0
        %v1207 = vadd.f32 0.0, %v1206
        %v1208 = vpop.f32.mrb[0].mxu0
        %1209 = vmatprep.mubr.f32.mxu0 0.0
        %1210 = vmatmul.mubr.f32.gmra.mrb[0].mxu0 %v1117
        %v1211 = vpop.f32.mrb[0].mxu0
        %v1212 = vadd.f32 0.0, %v1211
        %v1213 = vpop.f32.mrb[0].mxu0
        %1214 = vmatprep.mubr.f32.mxu0 0.0
        %1215 = vmatmul.mubr.f32.gmra.mrb[0].mxu0 %v1120
        %v1216 = vpop.f32.mrb[0].mxu0
        %v1217 = vadd.f32 0.0, %v1216
        %v1218 = vpop.f32.mrb[0].mxu0
        %1219 = vmatprep.mubr.f32.mxu0 0.0
        %1220 = vmatmul.mubr.f32.gmra.mrb[0].mxu0 %v1123
        %v1221 = vpop.f32.mrb[0].mxu0
        %v1222 = vadd.f32 0.0, %v1221
        %v1223 = vpop.f32.mrb[0].mxu0
        %1224 = vmatprep.mubr.f32.mxu0 0.0
        %1225 = vmatmul.mubr.f32.gmra.mrb[0].mxu0 %v1126
        %v1226 = vpop.f32.mrb[0].mxu0
        %v1227 = vadd.f32 0.0, %v1226
        %v1228 = vpop.f32.mrb[0].mxu0
        %1229 = vmatprep.mubr.f32.mxu0 0.0
        %1230 = vmatmul.mubr.f32.gmra.mrb[0].mxu0 %v1129
        %v1231 = vpop.f32.mrb[0].mxu0
        %v1232 = vadd.f32 0.0, %v1231
        %v1233 = vpop.f32.mrb[0].mxu0
        %1234 = vmatprep.mubr.f32.mxu0 0.0
        %1235 = vmatmul.mubr.f32.gmra.mrb[0].mxu0 %v1132
        %v1236 = vpop.f32.mrb[0].mxu0
        %v1237 = vadd.f32 0.0, %v1236
        %v1238 = vpop.f32.mrb[0].mxu0
        %1239 = vmatprep.mubr.f32.mxu0 0.0
        %1240 = vmatmul.mubr.f32.gmra.mrb[0].mxu0 %v1135
        %v1241 = vpop.f32.mrb[0].mxu0
        %v1242 = vadd.f32 0.0, %v1241
        %v1243 = vpop.f32.mrb[0].mxu0
        %1244 = vdwg.mxu0
        %v1245 = vadd.f32 %v1094, %v1207
        %v1246 = vadd.f32 %v1095, %v1212
        %v1247 = vadd.f32 %v1096, %v1217
        %v1248 = vadd.f32 %v1097, %v1222
        %v1249 = vadd.f32 %v1098, %v1227
        %v1250 = vadd.f32 %v1099, %v1232
        %v1251 = vadd.f32 %v1100, %v1237
        %v1252 = vadd.f32 %v1101, %v1242
        %s1253 = scalar_lea.vmem %s206, 160
        %v1254 = vld [vmem:[%s1253] sm:$0xff]
        %v1255 = vld [vmem:[%s1253 + $0x10] sm:$0xff]
        %v1256 = vld [vmem:[%s1253 + $0x20] sm:$0xff]
        %v1257 = vld [vmem:[%s1253 + $0x30] sm:$0xff]
        %v1258 = vld [vmem:[%s1253 + $0x40] sm:$0xff]
        %v1259 = vld [vmem:[%s1253 + $0x50] sm:$0xff]
        %v1260 = vld [vmem:[%s1253 + $0x60] sm:$0xff]
        %v1261 = vld [vmem:[%s1253 + $0x70] sm:$0xff]
        %s1262 = scalar_lea.vmem %s210, 28
        %v1263 = vld [vmem:[%s1262] sm:$0xf]
        %v1265 = vsel %vm234, %v1254, 0
        %v1268 = vsel %vm234, %v1255, 0
        %v1271 = vsel %vm234, %v1256, 0
        %v1274 = vsel %vm234, %v1257, 0
        %v1277 = vsel %vm234, %v1258, 0
        %v1280 = vsel %vm234, %v1259, 0
        %v1283 = vsel %vm234, %v1260, 0
        %v1286 = vsel %vm234, %v1261, 0
        %v1289 = vsel %vm259, %v1263, 0
        %1291 = vmatprep.subr.mxu0 0.0
        %1292 = vmatpush1.msra.mxu0 %v1289
        %1293 = vmatprep.subr.mxu0 0.0
        %1294 = vmatpush1.msra.mxu0 0.0
        %1295 = vmatprep.subr.mxu0 0.0
        %1296 = vmatpush1.msra.mxu0 0.0
        %1297 = vmatprep.subr.mxu0 0.0
        %1298 = vmatpush1.msra.mxu0 0.0
        %1299 = vmatprep.subr.mxu0 0.0
        %1300 = vmatpush1.msra.mxu0 0.0
        %1301 = vmatprep.subr.mxu0 0.0
        %1302 = vmatpush1.msra.mxu0 0.0
        %1303 = vmatprep.subr.mxu0 0.0
        %1304 = vmatpush1.msra.mxu0 0.0
        %1305 = vmatprep.subr.mxu0 0.0
        %1306 = vmatpush1.msra.mxu0 0.0
        %1307 = vmatprep.subr.mxu0 0.0
        %1308 = vmatpush1.msra.mxu0 0.0
        %1309 = vmatprep.subr.mxu0 0.0
        %1310 = vmatpush1.msra.mxu0 0.0
        %1311 = vmatprep.subr.mxu0 0.0
        %1312 = vmatpush1.msra.mxu0 0.0
        %1313 = vmatprep.subr.mxu0 0.0
        %1314 = vmatpush1.msra.mxu0 0.0
        %1315 = vmatprep.subr.mxu0 0.0
        %1316 = vmatpush1.msra.mxu0 0.0
        %1317 = vmatprep.subr.mxu0 0.0
        %1318 = vmatpush1.msra.mxu0 0.0
        %1319 = vmatprep.subr.mxu0 0.0
        %1320 = vmatpush1.msra.mxu0 0.0
        %1321 = vmatprep.subr.mxu0 0.0
        %1322 = vmatpush1.msra.mxu0 0.0
        %1323 = vmatprep.subr.mxu0 0.0
        %1324 = vmatpush1.msra.mxu0 0.0
        %1325 = vmatprep.subr.mxu0 0.0
        %1326 = vmatpush1.msra.mxu0 0.0
        %1327 = vmatprep.subr.mxu0 0.0
        %1328 = vmatpush1.msra.mxu0 0.0
        %1329 = vmatprep.subr.mxu0 0.0
        %1330 = vmatpush1.msra.mxu0 0.0
        %1331 = vmatprep.subr.mxu0 0.0
        %1332 = vmatpush1.msra.mxu0 0.0
        %1333 = vmatprep.subr.mxu0 0.0
        %1334 = vmatpush1.msra.mxu0 0.0
        %1335 = vmatprep.subr.mxu0 0.0
        %1336 = vmatpush1.msra.mxu0 0.0
        %1337 = vmatprep.subr.mxu0 0.0
        %1338 = vmatpush1.msra.mxu0 0.0
        %1339 = vmatprep.subr.mxu0 0.0
        %1340 = vmatpush1.msra.mxu0 0.0
        %1341 = vmatprep.subr.mxu0 0.0
        %1342 = vmatpush1.msra.mxu0 0.0
        %1343 = vmatprep.subr.mxu0 0.0
        %1344 = vmatpush1.msra.mxu0 0.0
        %1345 = vmatprep.subr.mxu0 0.0
        %1346 = vmatpush1.msra.mxu0 0.0
        %1347 = vmatprep.subr.mxu0 0.0
        %1348 = vmatpush1.msra.mxu0 0.0
        %1349 = vmatprep.subr.mxu0 0.0
        %1350 = vmatpush1.msra.mxu0 0.0
        %1351 = vmatprep.subr.mxu0 0.0
        %1352 = vmatpush1.msra.mxu0 0.0
        %1353 = vmatprep.subr.mxu0 0.0
        %1354 = vmatpush1.msra.mxu0 0.0
        %1355 = vmatprep.mubr.f32.mxu0 0.0
        %1356 = vmatmul.mubr.f32.gmra.mrb[0].mxu0 %v1265
        %v1357 = vpop.f32.mrb[0].mxu0
        %v1358 = vadd.f32 0.0, %v1357
        %v1359 = vpop.f32.mrb[0].mxu0
        %1360 = vmatprep.mubr.f32.mxu0 0.0
        %1361 = vmatmul.mubr.f32.gmra.mrb[0].mxu0 %v1268
        %v1362 = vpop.f32.mrb[0].mxu0
        %v1363 = vadd.f32 0.0, %v1362
        %v1364 = vpop.f32.mrb[0].mxu0
        %1365 = vmatprep.mubr.f32.mxu0 0.0
        %1366 = vmatmul.mubr.f32.gmra.mrb[0].mxu0 %v1271
        %v1367 = vpop.f32.mrb[0].mxu0
        %v1368 = vadd.f32 0.0, %v1367
        %v1369 = vpop.f32.mrb[0].mxu0
        %1370 = vmatprep.mubr.f32.mxu0 0.0
        %1371 = vmatmul.mubr.f32.gmra.mrb[0].mxu0 %v1274
        %v1372 = vpop.f32.mrb[0].mxu0
        %v1373 = vadd.f32 0.0, %v1372
        %v1374 = vpop.f32.mrb[0].mxu0
        %1375 = vmatprep.mubr.f32.mxu0 0.0
        %1376 = vmatmul.mubr.f32.gmra.mrb[0].mxu0 %v1277
        %v1377 = vpop.f32.mrb[0].mxu0
        %v1378 = vadd.f32 0.0, %v1377
        %v1379 = vpop.f32.mrb[0].mxu0
        %1380 = vmatprep.mubr.f32.mxu0 0.0
        %1381 = vmatmul.mubr.f32.gmra.mrb[0].mxu0 %v1280
        %v1382 = vpop.f32.mrb[0].mxu0
        %v1383 = vadd.f32 0.0, %v1382
        %v1384 = vpop.f32.mrb[0].mxu0
        %1385 = vmatprep.mubr.f32.mxu0 0.0
        %1386 = vmatmul.mubr.f32.gmra.mrb[0].mxu0 %v1283
        %v1387 = vpop.f32.mrb[0].mxu0
        %v1388 = vadd.f32 0.0, %v1387
        %v1389 = vpop.f32.mrb[0].mxu0
        %1390 = vmatprep.mubr.f32.mxu0 0.0
        %1391 = vmatmul.mubr.f32.gmra.mrb[0].mxu0 %v1286
        %v1392 = vpop.f32.mrb[0].mxu0
        %v1393 = vadd.f32 0.0, %v1392
        %v1394 = vpop.f32.mrb[0].mxu0
        %1395 = vdwg.mxu0
        %v1396 = vadd.f32 %v1245, %v1358
        %v1397 = vadd.f32 %v1246, %v1363
        %v1398 = vadd.f32 %v1247, %v1368
        %v1399 = vadd.f32 %v1248, %v1373
        %v1400 = vadd.f32 %v1249, %v1378
        %v1401 = vadd.f32 %v1250, %v1383
        %v1402 = vadd.f32 %v1251, %v1388
        %v1403 = vadd.f32 %v1252, %v1393
        %v1404 = vld [vmem:[%s1102 + $0x1] sm:$0xff]
        %v1405 = vld [vmem:[%s1102 + $0x11] sm:$0xff]
        %v1406 = vld [vmem:[%s1102 + $0x21] sm:$0xff]
        %v1407 = vld [vmem:[%s1102 + $0x31] sm:$0xff]
        %v1408 = vld [vmem:[%s1102 + $0x41] sm:$0xff]
        %v1409 = vld [vmem:[%s1102 + $0x51] sm:$0xff]
        %v1410 = vld [vmem:[%s1102 + $0x61] sm:$0xff]
        %v1411 = vld [vmem:[%s1102 + $0x71] sm:$0xff]
        %s1412 = scalar_lea.vmem %s210, 32
        %v1413 = vld [vmem:[%s1412] sm:$0xf]
        %v1415 = vsel %vm234, %v1404, 0
        %v1418 = vsel %vm234, %v1405, 0
        %v1421 = vsel %vm234, %v1406, 0
        %v1424 = vsel %vm234, %v1407, 0
        %v1427 = vsel %vm234, %v1408, 0
        %v1430 = vsel %vm234, %v1409, 0
        %v1433 = vsel %vm234, %v1410, 0
        %v1436 = vsel %vm234, %v1411, 0
        %v1439 = vsel %vm259, %v1413, 0
        %1441 = vmatprep.subr.mxu0 0.0
        %1442 = vmatpush1.msra.mxu0 %v1439
        %1443 = vmatprep.subr.mxu0 0.0
        %1444 = vmatpush1.msra.mxu0 0.0
        %1445 = vmatprep.subr.mxu0 0.0
        %1446 = vmatpush1.msra.mxu0 0.0
        %1447 = vmatprep.subr.mxu0 0.0
        %1448 = vmatpush1.msra.mxu0 0.0
        %1449 = vmatprep.subr.mxu0 0.0
        %1450 = vmatpush1.msra.mxu0 0.0
        %1451 = vmatprep.subr.mxu0 0.0
        %1452 = vmatpush1.msra.mxu0 0.0
        %1453 = vmatprep.subr.mxu0 0.0
        %1454 = vmatpush1.msra.mxu0 0.0
        %1455 = vmatprep.subr.mxu0 0.0
        %1456 = vmatpush1.msra.mxu0 0.0
        %1457 = vmatprep.subr.mxu0 0.0
        %1458 = vmatpush1.msra.mxu0 0.0
        %1459 = vmatprep.subr.mxu0 0.0
        %1460 = vmatpush1.msra.mxu0 0.0
        %1461 = vmatprep.subr.mxu0 0.0
        %1462 = vmatpush1.msra.mxu0 0.0
        %1463 = vmatprep.subr.mxu0 0.0
        %1464 = vmatpush1.msra.mxu0 0.0
        %1465 = vmatprep.subr.mxu0 0.0
        %1466 = vmatpush1.msra.mxu0 0.0
        %1467 = vmatprep.subr.mxu0 0.0
        %1468 = vmatpush1.msra.mxu0 0.0
        %1469 = vmatprep.subr.mxu0 0.0
        %1470 = vmatpush1.msra.mxu0 0.0
        %1471 = vmatprep.subr.mxu0 0.0
        %1472 = vmatpush1.msra.mxu0 0.0
        %1473 = vmatprep.subr.mxu0 0.0
        %1474 = vmatpush1.msra.mxu0 0.0
        %1475 = vmatprep.subr.mxu0 0.0
        %1476 = vmatpush1.msra.mxu0 0.0
        %1477 = vmatprep.subr.mxu0 0.0
        %1478 = vmatpush1.msra.mxu0 0.0
        %1479 = vmatprep.subr.mxu0 0.0
        %1480 = vmatpush1.msra.mxu0 0.0
        %1481 = vmatprep.subr.mxu0 0.0
        %1482 = vmatpush1.msra.mxu0 0.0
        %1483 = vmatprep.subr.mxu0 0.0
        %1484 = vmatpush1.msra.mxu0 0.0
        %1485 = vmatprep.subr.mxu0 0.0
        %1486 = vmatpush1.msra.mxu0 0.0
        %1487 = vmatprep.subr.mxu0 0.0
        %1488 = vmatpush1.msra.mxu0 0.0
        %1489 = vmatprep.subr.mxu0 0.0
        %1490 = vmatpush1.msra.mxu0 0.0
        %1491 = vmatprep.subr.mxu0 0.0
        %1492 = vmatpush1.msra.mxu0 0.0
        %1493 = vmatprep.subr.mxu0 0.0
        %1494 = vmatpush1.msra.mxu0 0.0
        %1495 = vmatprep.subr.mxu0 0.0
        %1496 = vmatpush1.msra.mxu0 0.0
        %1497 = vmatprep.subr.mxu0 0.0
        %1498 = vmatpush1.msra.mxu0 0.0
        %1499 = vmatprep.subr.mxu0 0.0
        %1500 = vmatpush1.msra.mxu0 0.0
        %1501 = vmatprep.subr.mxu0 0.0
        %1502 = vmatpush1.msra.mxu0 0.0
        %1503 = vmatprep.subr.mxu0 0.0
        %1504 = vmatpush1.msra.mxu0 0.0
        %1505 = vmatprep.mubr.f32.mxu0 0.0
        %1506 = vmatmul.mubr.f32.gmra.mrb[0].mxu0 %v1415
        %v1507 = vpop.f32.mrb[0].mxu0
        %v1508 = vadd.f32 0.0, %v1507
        %v1509 = vpop.f32.mrb[0].mxu0
        %1510 = vmatprep.mubr.f32.mxu0 0.0
        %1511 = vmatmul.mubr.f32.gmra.mrb[0].mxu0 %v1418
        %v1512 = vpop.f32.mrb[0].mxu0
        %v1513 = vadd.f32 0.0, %v1512
        %v1514 = vpop.f32.mrb[0].mxu0
        %1515 = vmatprep.mubr.f32.mxu0 0.0
        %1516 = vmatmul.mubr.f32.gmra.mrb[0].mxu0 %v1421
        %v1517 = vpop.f32.mrb[0].mxu0
        %v1518 = vadd.f32 0.0, %v1517
        %v1519 = vpop.f32.mrb[0].mxu0
        %1520 = vmatprep.mubr.f32.mxu0 0.0
        %1521 = vmatmul.mubr.f32.gmra.mrb[0].mxu0 %v1424
        %v1522 = vpop.f32.mrb[0].mxu0
        %v1523 = vadd.f32 0.0, %v1522
        %v1524 = vpop.f32.mrb[0].mxu0
        %1525 = vmatprep.mubr.f32.mxu0 0.0
        %1526 = vmatmul.mubr.f32.gmra.mrb[0].mxu0 %v1427
        %v1527 = vpop.f32.mrb[0].mxu0
        %v1528 = vadd.f32 0.0, %v1527
        %v1529 = vpop.f32.mrb[0].mxu0
        %1530 = vmatprep.mubr.f32.mxu0 0.0
        %1531 = vmatmul.mubr.f32.gmra.mrb[0].mxu0 %v1430
        %v1532 = vpop.f32.mrb[0].mxu0
        %v1533 = vadd.f32 0.0, %v1532
        %v1534 = vpop.f32.mrb[0].mxu0
        %1535 = vmatprep.mubr.f32.mxu0 0.0
        %1536 = vmatmul.mubr.f32.gmra.mrb[0].mxu0 %v1433
        %v1537 = vpop.f32.mrb[0].mxu0
        %v1538 = vadd.f32 0.0, %v1537
        %v1539 = vpop.f32.mrb[0].mxu0
        %1540 = vmatprep.mubr.f32.mxu0 0.0
        %1541 = vmatmul.mubr.f32.gmra.mrb[0].mxu0 %v1436
        %v1542 = vpop.f32.mrb[0].mxu0
        %v1543 = vadd.f32 0.0, %v1542
        %v1544 = vpop.f32.mrb[0].mxu0
        %1545 = vdwg.mxu0
        %v1546 = vadd.f32 %v1396, %v1508
        %v1547 = vadd.f32 %v1397, %v1513
        %v1548 = vadd.f32 %v1398, %v1518
        %v1549 = vadd.f32 %v1399, %v1523
        %v1550 = vadd.f32 %v1400, %v1528
        %v1551 = vadd.f32 %v1401, %v1533
        %v1552 = vadd.f32 %v1402, %v1538
        %v1553 = vadd.f32 %v1403, %v1543
        %v1554 = vld [vmem:[%s213] sm:$0x1]
        %v1556 = vlaneseq
        %v1557 = vshrl.u32 %v1556, 7
        %v1558 = vsub.s32 0, %v1557
        %v1559 = vrot.slane %v1554, %v1558
        %v1561 = vadd.f32 %v1546, %v1559
        %v1562 = vadd.f32 %v1547, %v1559
        %v1563 = vadd.f32 %v1548, %v1559
        %v1564 = vadd.f32 %v1549, %v1559
        %v1565 = vadd.f32 %v1550, %v1559
        %v1566 = vadd.f32 %v1551, %v1559
        %v1567 = vadd.f32 %v1552, %v1559
        %v1568 = vadd.f32 %v1553, %v1559
        %1569 = vst [vmem:[%s201] sm:$0xff] %v1561
        %1570 = vst [vmem:[%s201 + $0x8] sm:$0xff] %v1562
        %1571 = vst [vmem:[%s201 + $0x10] sm:$0xff] %v1563
        %1572 = vst [vmem:[%s201 + $0x18] sm:$0xff] %v1564
        %1573 = vst [vmem:[%s201 + $0x20] sm:$0xff] %v1565
        %1574 = vst [vmem:[%s201 + $0x28] sm:$0xff] %v1566
        %1575 = vst [vmem:[%s201 + $0x30] sm:$0xff] %v1567
        %1576 = vst [vmem:[%s201 + $0x38] sm:$0xff] %v1568
        %s1577 = sand.u32 %s117, 1
        %s1578 = scalar_lea.sflag [#allocation3], %s1577
        %s1579 = sand.u32 %s117, 1
        %s1580 = smul.addr %s1579, 64
        %s1581 = scalar_lea.vmem [#allocation2], %s1580
        // Predicated region
        $region33: #{tpu_custom_call.1} parent=31 // pred_check
          %p1582 = pneg %p127
        $region34: #{tpu_custom_call.1} parent=31 // pred_check_branch
          %1584 = sbr.rel (%p1582) target = $region36
        $region35: #{tpu_custom_call.1} parent=31 // pred_region
          %s1586 = ssub.s32 1024, 1024
          %1587 = vsyncadd %s1578, %s1586
          %s1588 = smul.addr %s21, 8
          %s1589 = sadd.s32 %s22, %s1588
          %s1590 = smul.addr %s1589, 128
          %s1591 = scalar_lea.hbm %s3, %s1590
          %s1592 = sshll.u32 %s1581, 4
          %s1593 = int_to_ptr.vmem [resolvable:$true] %s1592
          %1598 = dma.vmem_to_hbm [thread:$0]  %s1593, 1024, %s1591, %s1578, 128, 128, 8
        $region36: #{tpu_custom_call.1} parent=31 // pred_fallthru
          _
      $region32: #{tpu_custom_call.1} parent=5 // pred_fallthru
        _
      %p1599 = scmp.le.s32.totalorder 2, %s12
      // Predicated region
      $region37: #{tpu_custom_call.1} parent=5 // pred_check
        %p1600 = pneg %p1599
      $region38: #{tpu_custom_call.1} parent=5 // pred_check_branch
        %1602 = sbr.rel (%p1600) target = $region40
      $region39: #{tpu_custom_call.1} parent=5 // pred_region
        %s1603 = ssub.s32 %s12, 2
        // Predicated region
        $region41: #{tpu_custom_call.1} parent=39 // pred_check
          %p1604 = pneg %p133
        $region42: #{tpu_custom_call.1} parent=39 // pred_check_branch
          %1606 = sbr.rel (%p1604) target = $region44
        $region43: #{tpu_custom_call.1} parent=39 // pred_region
          %s1607 = sand.u32 %s118, 1
          %s1608 = scalar_lea.sflag [#allocation3], %s1607
          %s1609 = sand.u32 %s118, 1
          %s1610 = smul.addr %s1609, 64
          %s1611 = scalar_lea.vmem [#allocation2], %s1610
          %1612 = dma.done %s1608, 1024
        $region44: #{tpu_custom_call.1} parent=39 // pred_fallthru
          _
      $region40: #{tpu_custom_call.1} parent=5 // pred_fallthru
        _
    $region6: #{tpu_custom_call.1} parent=1 // loop_footer
      %s16 = sadd.s32 1, %s12
    $region7: #{tpu_custom_call.1} parent=1 // loop_footer_branch
      %11 = sbr.rel target = $region3
    $region8: #{tpu_custom_call.1} parent=1 // loop_exit
      _
    %1613 = vsyncpa [#allocation3], 1
    %s1614 = scalar_lea.sflag [#allocation3], 1
    %1615 = vsyncpa %s1614, 1

</llo_original>
